<compile_context>
chip_gen: v7x
topology: tpu7x:2x2x1
jax: 0.10.0
libtpu: 0.0.40
codegen_flags: <defaults>
</compile_context>

<pallas_src>
import functools

import jax
import jax.numpy as jnp
from jax import lax
from jax.experimental import pallas as pl
from jax.experimental.pallas import tpu as pltpu

EPS = 1e-5
MXU_DTYPE = jnp.float32     # set to jnp.bfloat16 on v6e/v7x (relax the self-check tol)


def _full_spec(shape):
    nd = len(shape)
    return pl.BlockSpec(shape, lambda *_: (0,) * nd)


def _fused_residual_block_kernel(x_ref, wb_ref, bn_ref, p_ref, o_ref, xpad_s,
                                 *, n, h, w, c):
    """x_ref/o_ref : (N*H, W*C) lane-dense activations.
    wb_ref        : (6, W*C, W*C) banded conv weights, index = stage*3 + ky.
    bn_ref        : (4, W*C) pre-tiled [gamma1, beta1, gamma2, beta2].
    p_ref         : (W*C, W*C) per-channel group-sum-and-broadcast matrix.
    xpad_s        : (N, H+2, W*C) padded-activation VMEM scratch (reused by both stages).
    """
    wc = w * c
    nh = n * h
    inv_cnt = 1.0 / float(n * h * w)

    # Zero ONLY the halo rows; they stay zero across both stages (interior is rewritten).
    xpad_s[:, 0:1, :] = jnp.zeros((n, 1, wc), jnp.float32)
    xpad_s[:, h + 1:h + 2, :] = jnp.zeros((n, 1, wc), jnp.float32)

    def conv_bn_relu(inp2d, stage):
        # In-kernel zero padding (rows only -- kx padding lives in the banded weights).
        xpad_s[:, 1:h + 1, :] = inp2d.reshape(n, h, wc)

        # 3x3 "same" conv == 3 row-shifted matmuls with (W*C, W*C) banded weights.
        acc = None
        for ky in range(3):
            lhs = xpad_s[:, ky:ky + h, :].reshape(nh, wc).astype(MXU_DTYPE)
            part = jnp.dot(lhs, wb_ref[3 * stage + ky].astype(MXU_DTYPE),
                           preferred_element_type=jnp.float32)
            acc = part if acc is None else acc + part            # (N*H, W*C) f32

        # Training-mode BN, single-pass stats.  Per-channel totals (already tiled back
        # across the W lane-groups) via one tiny matmul against the group-sum matrix.
        # NOTE: E[x^2]-E[x]^2 is fine at this scale; switch to a two-pass reduction when
        # scaling the problem up.
        s = jnp.sum(acc, axis=0, keepdims=True)                  # (1, W*C)
        ss = jnp.sum(acc * acc, axis=0, keepdims=True)           # (1, W*C)
        s_c = jnp.dot(s, p_ref[...], preferred_element_type=jnp.float32)
        ss_c = jnp.dot(ss, p_ref[...], preferred_element_type=jnp.float32)
        mean = s_c * inv_cnt
        var = ss_c * inv_cnt - mean * mean
        gamma = bn_ref[2 * stage:2 * stage + 1, :]
        beta = bn_ref[2 * stage + 1:2 * stage + 2, :]
        scale = gamma * lax.rsqrt(var + EPS)                     # (1, W*C)
        shift = beta - mean * scale                              # conv bias cancels here
        return jnp.maximum(acc * scale + shift, 0.0)             # (N*H, W*C)

    y1 = conv_bn_relu(x_ref[...], 0)
    y2 = conv_bn_relu(y1, 1)

    # Residual add + final ReLU; x_ref is VMEM-resident, re-read here so it is not held
    # live across the two conv stages.
    o_ref[...] = jnp.maximum(y2 + x_ref[...], 0.0).astype(o_ref.dtype)


@jax.jit
def residual_block(x_nchw, params):
    """Forward pass of ResidualBlock.

    x_nchw : (N, 16, H, W) float32, NCHW (PyTorch layout).
    params : PyTorch-layout tensors
             (w1 (C,C,3,3), b1 (C,), g1 (C,), be1 (C,), w2, b2, g2, be2).
    """
    w1, b1, g1, be1, w2, b2, g2, be2 = params
    del b1, b2   # conv bias is a mathematical no-op under training-mode BatchNorm

    n, c, h, w = x_nchw.shape
    wc = w * c

    # NCHW -> NHWC -> lane-dense (N*H, W*C).
    x = jnp.transpose(x_nchw, (0, 2, 3, 1)).reshape(n * h, wc).astype(jnp.float32)

    # Banded conv weights: band[ky][x_in*C+ci, x_out*C+co] = W[co, ci, ky, x_in-x_out+1]
    # (zero outside the 3-wide band; W-boundary zero padding is implicit in the band).
    offs = (jnp.eye(w, k=1, dtype=jnp.float32),      # kx=0 : x_in = x_out - 1
            jnp.eye(w, dtype=jnp.float32),           # kx=1 : x_in = x_out
            jnp.eye(w, k=-1, dtype=jnp.float32))     # kx=2 : x_in = x_out + 1

    def banded(wt):                                  # (Cout, Cin, 3, 3) -> (3, W*C, W*C)
        wk = jnp.transpose(wt, (2, 3, 1, 0)).astype(jnp.float32)   # (ky, kx, ci, co)
        return jnp.stack([sum(jnp.kron(offs[kx], wk[ky, kx]) for kx in range(3))
                          for ky in range(3)])

    wb = jnp.concatenate([banded(w1), banded(w2)], axis=0)          # (6, W*C, W*C)

    def tile_c(v):                                   # (C,) -> (W*C,), value per channel
        return jnp.tile(v.astype(jnp.float32), w)

    bn = jnp.stack([tile_c(g1), tile_c(be1), tile_c(g2), tile_c(be2)])   # (4, W*C)

    # Group-sum-and-broadcast matrix: P[x*C+ci, x'*C+co] = (ci == co).
    p = jnp.kron(jnp.ones((w, w), jnp.float32), jnp.eye(c, dtype=jnp.float32))

    args = (x, wb, bn, p)
    out2d = pl.pallas_call(
        functools.partial(_fused_residual_block_kernel, n=n, h=h, w=w, c=c),
        out_shape=jax.ShapeDtypeStruct((n * h, wc), jnp.float32),
        in_specs=[_full_spec(a.shape) for a in args],
        out_specs=_full_spec((n * h, wc)),
        scratch_shapes=[pltpu.VMEM((n, h + 2, wc), jnp.float32)],
    )(*args)

    return jnp.transpose(out2d.reshape(n, h, w, c), (0, 3, 1, 2))    # back to NCHW


def _make_params(key, c=16):
    ks = jax.random.split(key, 8)
    w1 = jax.random.normal(ks[0], (c, c, 3, 3), jnp.float32) * 0.1   # PyTorch (O,I,kH,kW)
    b1 = jax.random.normal(ks[1], (c,), jnp.float32) * 0.05
    g1 = 1.0 + jax.random.normal(ks[2], (c,), jnp.float32) * 0.1
    be1 = jax.random.normal(ks[3], (c,), jnp.float32) * 0.05
    w2 = jax.random.normal(ks[4], (c, c, 3, 3), jnp.float32) * 0.1
    b2 = jax.random.normal(ks[5], (c,), jnp.float32) * 0.05
    g2 = 1.0 + jax.random.normal(ks[6], (c,), jnp.float32) * 0.1
    be2 = jax.random.normal(ks[7], (c,), jnp.float32) * 0.05
    return (w1, b1, g1, be1, w2, b2, g2, be2)


def _reference(x_nchw, params):
    """Pure-XLA reference of the PyTorch forward (training-mode BN), for verification."""
    w1, b1, g1, be1, w2, b2, g2, be2 = params

    def conv(inp, wt, b):
        y = lax.conv_general_dilated(inp, wt, window_strides=(1, 1), padding="SAME",
                                     dimension_numbers=("NCHW", "OIHW", "NCHW"))
        return y + b.reshape(1, -1, 1, 1)

    def bn_relu(y, g, beta):
        m = jnp.mean(y, axis=(0, 2, 3), keepdims=True)
        v = jnp.mean((y - m) ** 2, axis=(0, 2, 3), keepdims=True)
        y = (y - m) * lax.rsqrt(v + EPS)
        return jnp.maximum(y * g.reshape(1, -1, 1, 1) + beta.reshape(1, -1, 1, 1), 0.0)

    o = bn_relu(conv(x_nchw, w1, b1), g1, be1)
    o = bn_relu(conv(o, w2, b2), g2, be2)
    return jnp.maximum(o + x_nchw, 0.0)


if __name__ == "__main__":
    key = jax.random.PRNGKey(0)
    kx, kp = jax.random.split(key)

    N, C, H, W = 2, 16, 16, 16          # the module fixes 16 channels
    x = jax.random.normal(kx, (N, C, H, W), jnp.float32)
    params = _make_params(kp, C)

    out = jax.block_until_ready(residual_block(x, params))
    ref = jax.block_until_ready(_reference(x, params))

    assert out.shape == (N, C, H, W)
    assert jnp.allclose(out, ref, atol=2e-4, rtol=2e-4), "mismatch vs reference"

    print("KERNEL_OK")
</pallas_src>

<mosaic_0001>
module attributes {stable_mosaic.version = 11 : i64} {
  func.func @_fused_residual_block_kernel(%arg0: memref<32x256xf32, #tpu.memory_space<vmem>>, %arg1: memref<6x256x256xf32, #tpu.memory_space<vmem>>, %arg2: memref<4x256xf32, #tpu.memory_space<vmem>>, %arg3: memref<256x256xf32, #tpu.memory_space<vmem>>, %arg4: memref<32x256xf32, #tpu.memory_space<vmem>>, %arg5: memref<2x18x256xf32, #tpu.memory_space<vmem>>) attributes {dimension_semantics = [], scalar_prefetch = 0 : i64, scratch_operands = 1 : i64, tpu.core_type = #tpu.core_type<tc>} {
    %cst = arith.constant 0.000000e+00 : f32
    %0 = vector.broadcast %cst : f32 to vector<2x1x256xf32>
    %c0 = arith.constant 0 : index
    %c0_0 = arith.constant 0 : index
    %c0_1 = arith.constant 0 : index
    %1 = vector.load %arg5[%c0, %c0_0, %c0_1] : memref<2x18x256xf32, #tpu.memory_space<vmem>>, vector<2x1x256xf32>
    tpu.vector_store %arg5[%c0, %c0_0, %c0_1], %0 {strides = array<i32>} : memref<2x18x256xf32, #tpu.memory_space<vmem>>, vector<2x1x256xf32>,
    %cst_2 = arith.constant 0.000000e+00 : f32
    %2 = vector.broadcast %cst_2 : f32 to vector<2x1x256xf32>
    %c0_3 = arith.constant 0 : index
    %c17 = arith.constant 17 : index
    %c0_4 = arith.constant 0 : index
    %3 = vector.load %arg5[%c0_3, %c17, %c0_4] : memref<2x18x256xf32, #tpu.memory_space<vmem>>, vector<2x1x256xf32>
    tpu.vector_store %arg5[%c0_3, %c17, %c0_4], %2 {strides = array<i32>} : memref<2x18x256xf32, #tpu.memory_space<vmem>>, vector<2x1x256xf32>,
    %c0_5 = arith.constant 0 : index
    %c0_6 = arith.constant 0 : index
    %4 = vector.load %arg0[%c0_5, %c0_6] : memref<32x256xf32, #tpu.memory_space<vmem>>, vector<32x256xf32>
    %5 = vector.shape_cast %4 : vector<32x256xf32> to vector<2x16x256xf32>
    %c0_7 = arith.constant 0 : index
    %c1 = arith.constant 1 : index
    %c0_8 = arith.constant 0 : index
    %6 = vector.load %arg5[%c0_7, %c1, %c0_8] : memref<2x18x256xf32, #tpu.memory_space<vmem>>, vector<2x16x256xf32>
    tpu.vector_store %arg5[%c0_7, %c1, %c0_8], %5 {strides = array<i32>} : memref<2x18x256xf32, #tpu.memory_space<vmem>>, vector<2x16x256xf32>,
    %c0_9 = arith.constant 0 : index
    %c0_10 = arith.constant 0 : index
    %c0_11 = arith.constant 0 : index
    %7 = vector.load %arg5[%c0_9, %c0_10, %c0_11] : memref<2x18x256xf32, #tpu.memory_space<vmem>>, vector<2x16x256xf32>
    %8 = vector.shape_cast %7 : vector<2x16x256xf32> to vector<32x256xf32>
    %c0_12 = arith.constant 0 : index
    %c0_13 = arith.constant 0 : index
    %c0_14 = arith.constant 0 : index
    %9 = vector.load %arg1[%c0_12, %c0_13, %c0_14] : memref<6x256x256xf32, #tpu.memory_space<vmem>>, vector<1x256x256xf32>
    %10 = vector.shape_cast %9 : vector<1x256x256xf32> to vector<256x256xf32>
    %cst_15 = arith.constant dense<0.000000e+00> : vector<32x256xf32>
    %11 = tpu.matmul %8, %10, %cst_15 {dimension_numbers = #tpu.dot_dimension_numbers<[1], [0], [0], [1], [0, 0, 1, 1], [], []>} : vector<32x256xf32>, vector<256x256xf32>, vector<32x256xf32> -> vector<32x256xf32>
    %c0_16 = arith.constant 0 : index
    %c1_17 = arith.constant 1 : index
    %c0_18 = arith.constant 0 : index
    %12 = vector.load %arg5[%c0_16, %c1_17, %c0_18] : memref<2x18x256xf32, #tpu.memory_space<vmem>>, vector<2x16x256xf32>
    %13 = vector.shape_cast %12 : vector<2x16x256xf32> to vector<32x256xf32>
    %c1_19 = arith.constant 1 : index
    %c0_20 = arith.constant 0 : index
    %c0_21 = arith.constant 0 : index
    %14 = vector.load %arg1[%c1_19, %c0_20, %c0_21] : memref<6x256x256xf32, #tpu.memory_space<vmem>>, vector<1x256x256xf32>
    %15 = vector.shape_cast %14 : vector<1x256x256xf32> to vector<256x256xf32>
    %cst_22 = arith.constant dense<0.000000e+00> : vector<32x256xf32>
    %16 = tpu.matmul %13, %15, %cst_22 {dimension_numbers = #tpu.dot_dimension_numbers<[1], [0], [0], [1], [0, 0, 1, 1], [], []>} : vector<32x256xf32>, vector<256x256xf32>, vector<32x256xf32> -> vector<32x256xf32>
    %17 = arith.addf %11, %16 : vector<32x256xf32>
    %c0_23 = arith.constant 0 : index
    %c2 = arith.constant 2 : index
    %c0_24 = arith.constant 0 : index
    %18 = vector.load %arg5[%c0_23, %c2, %c0_24] : memref<2x18x256xf32, #tpu.memory_space<vmem>>, vector<2x16x256xf32>
    %19 = vector.shape_cast %18 : vector<2x16x256xf32> to vector<32x256xf32>
    %c2_25 = arith.constant 2 : index
    %c0_26 = arith.constant 0 : index
    %c0_27 = arith.constant 0 : index
    %20 = vector.load %arg1[%c2_25, %c0_26, %c0_27] : memref<6x256x256xf32, #tpu.memory_space<vmem>>, vector<1x256x256xf32>
    %21 = vector.shape_cast %20 : vector<1x256x256xf32> to vector<256x256xf32>
    %cst_28 = arith.constant dense<0.000000e+00> : vector<32x256xf32>
    %22 = tpu.matmul %19, %21, %cst_28 {dimension_numbers = #tpu.dot_dimension_numbers<[1], [0], [0], [1], [0, 0, 1, 1], [], []>} : vector<32x256xf32>, vector<256x256xf32>, vector<32x256xf32> -> vector<32x256xf32>
    %23 = arith.addf %17, %22 : vector<32x256xf32>
    %cst_29 = arith.constant dense<0.000000e+00> : vector<256xf32>
    %24 = vector.multi_reduction <add>, %23, %cst_29 [0] : vector<32x256xf32> to vector<256xf32>
    %25 = vector.shape_cast %24 : vector<256xf32> to vector<1x256xf32>
    %26 = arith.mulf %23, %23 : vector<32x256xf32>
    %cst_30 = arith.constant dense<0.000000e+00> : vector<256xf32>
    %27 = vector.multi_reduction <add>, %26, %cst_30 [0] : vector<32x256xf32> to vector<256xf32>
    %28 = vector.shape_cast %27 : vector<256xf32> to vector<1x256xf32>
    %c0_31 = arith.constant 0 : index
    %c0_32 = arith.constant 0 : index
    %29 = vector.load %arg3[%c0_31, %c0_32] : memref<256x256xf32, #tpu.memory_space<vmem>>, vector<256x256xf32>
    %cst_33 = arith.constant dense<0.000000e+00> : vector<1x256xf32>
    %30 = tpu.matmul %25, %29, %cst_33 {dimension_numbers = #tpu.dot_dimension_numbers<[1], [0], [0], [1], [0, 0, 1, 1], [], []>} : vector<1x256xf32>, vector<256x256xf32>, vector<1x256xf32> -> vector<1x256xf32>
    %c0_34 = arith.constant 0 : index
    %c0_35 = arith.constant 0 : index
    %31 = vector.load %arg3[%c0_34, %c0_35] : memref<256x256xf32, #tpu.memory_space<vmem>>, vector<256x256xf32>
    %cst_36 = arith.constant dense<0.000000e+00> : vector<1x256xf32>
    %32 = tpu.matmul %28, %31, %cst_36 {dimension_numbers = #tpu.dot_dimension_numbers<[1], [0], [0], [1], [0, 0, 1, 1], [], []>} : vector<1x256xf32>, vector<256x256xf32>, vector<1x256xf32> -> vector<1x256xf32>
    %cst_37 = arith.constant 0.001953125 : f32
    %33 = vector.broadcast %cst_37 : f32 to vector<1x256xf32>
    %34 = arith.mulf %30, %33 : vector<1x256xf32>
    %cst_38 = arith.constant 0.001953125 : f32
    %35 = vector.broadcast %cst_38 : f32 to vector<1x256xf32>
    %36 = arith.mulf %32, %35 : vector<1x256xf32>
    %37 = arith.mulf %34, %34 : vector<1x256xf32>
    %38 = arith.subf %36, %37 : vector<1x256xf32>
    %c0_39 = arith.constant 0 : index
    %c0_40 = arith.constant 0 : index
    %39 = vector.load %arg2[%c0_39, %c0_40] : memref<4x256xf32, #tpu.memory_space<vmem>>, vector<1x256xf32>
    %c1_41 = arith.constant 1 : index
    %c0_42 = arith.constant 0 : index
    %40 = vector.load %arg2[%c1_41, %c0_42] : memref<4x256xf32, #tpu.memory_space<vmem>>, vector<1x256xf32>
    %cst_43 = arith.constant 9.99999974E-6 : f32
    %41 = vector.broadcast %cst_43 : f32 to vector<1x256xf32>
    %42 = arith.addf %38, %41 : vector<1x256xf32>
    %43 = math.rsqrt %42 : vector<1x256xf32>
    %44 = arith.mulf %39, %43 : vector<1x256xf32>
    %45 = arith.mulf %34, %44 : vector<1x256xf32>
    %46 = arith.subf %40, %45 : vector<1x256xf32>
    %47 = vector.broadcast %44 : vector<1x256xf32> to vector<32x256xf32>
    %48 = arith.mulf %23, %47 : vector<32x256xf32>
    %49 = vector.broadcast %46 : vector<1x256xf32> to vector<32x256xf32>
    %50 = arith.addf %48, %49 : vector<32x256xf32>
    %cst_44 = arith.constant 0.000000e+00 : f32
    %51 = vector.broadcast %cst_44 : f32 to vector<32x256xf32>
    %52 = arith.maximumf %50, %51 : vector<32x256xf32>
    %53 = vector.shape_cast %52 : vector<32x256xf32> to vector<2x16x256xf32>
    %c0_45 = arith.constant 0 : index
    %c1_46 = arith.constant 1 : index
    %c0_47 = arith.constant 0 : index
    %54 = vector.load %arg5[%c0_45, %c1_46, %c0_47] : memref<2x18x256xf32, #tpu.memory_space<vmem>>, vector<2x16x256xf32>
    tpu.vector_store %arg5[%c0_45, %c1_46, %c0_47], %53 {strides = array<i32>} : memref<2x18x256xf32, #tpu.memory_space<vmem>>, vector<2x16x256xf32>,
    %c0_48 = arith.constant 0 : index
    %c0_49 = arith.constant 0 : index
    %c0_50 = arith.constant 0 : index
    %55 = vector.load %arg5[%c0_48, %c0_49, %c0_50] : memref<2x18x256xf32, #tpu.memory_space<vmem>>, vector<2x16x256xf32>
    %56 = vector.shape_cast %55 : vector<2x16x256xf32> to vector<32x256xf32>
    %c3 = arith.constant 3 : index
    %c0_51 = arith.constant 0 : index
    %c0_52 = arith.constant 0 : index
    %57 = vector.load %arg1[%c3, %c0_51, %c0_52] : memref<6x256x256xf32, #tpu.memory_space<vmem>>, vector<1x256x256xf32>
    %58 = vector.shape_cast %57 : vector<1x256x256xf32> to vector<256x256xf32>
    %cst_53 = arith.constant dense<0.000000e+00> : vector<32x256xf32>
    %59 = tpu.matmul %56, %58, %cst_53 {dimension_numbers = #tpu.dot_dimension_numbers<[1], [0], [0], [1], [0, 0, 1, 1], [], []>} : vector<32x256xf32>, vector<256x256xf32>, vector<32x256xf32> -> vector<32x256xf32>
    %c0_54 = arith.constant 0 : index
    %c1_55 = arith.constant 1 : index
    %c0_56 = arith.constant 0 : index
    %60 = vector.load %arg5[%c0_54, %c1_55, %c0_56] : memref<2x18x256xf32, #tpu.memory_space<vmem>>, vector<2x16x256xf32>
    %61 = vector.shape_cast %60 : vector<2x16x256xf32> to vector<32x256xf32>
    %c4 = arith.constant 4 : index
    %c0_57 = arith.constant 0 : index
    %c0_58 = arith.constant 0 : index
    %62 = vector.load %arg1[%c4, %c0_57, %c0_58] : memref<6x256x256xf32, #tpu.memory_space<vmem>>, vector<1x256x256xf32>
    %63 = vector.shape_cast %62 : vector<1x256x256xf32> to vector<256x256xf32>
    %cst_59 = arith.constant dense<0.000000e+00> : vector<32x256xf32>
    %64 = tpu.matmul %61, %63, %cst_59 {dimension_numbers = #tpu.dot_dimension_numbers<[1], [0], [0], [1], [0, 0, 1, 1], [], []>} : vector<32x256xf32>, vector<256x256xf32>, vector<32x256xf32> -> vector<32x256xf32>
    %65 = arith.addf %59, %64 : vector<32x256xf32>
    %c0_60 = arith.constant 0 : index
    %c2_61 = arith.constant 2 : index
    %c0_62 = arith.constant 0 : index
    %66 = vector.load %arg5[%c0_60, %c2_61, %c0_62] : memref<2x18x256xf32, #tpu.memory_space<vmem>>, vector<2x16x256xf32>
    %67 = vector.shape_cast %66 : vector<2x16x256xf32> to vector<32x256xf32>
    %c5 = arith.constant 5 : index
    %c0_63 = arith.constant 0 : index
    %c0_64 = arith.constant 0 : index
    %68 = vector.load %arg1[%c5, %c0_63, %c0_64] : memref<6x256x256xf32, #tpu.memory_space<vmem>>, vector<1x256x256xf32>
    %69 = vector.shape_cast %68 : vector<1x256x256xf32> to vector<256x256xf32>
    %cst_65 = arith.constant dense<0.000000e+00> : vector<32x256xf32>
    %70 = tpu.matmul %67, %69, %cst_65 {dimension_numbers = #tpu.dot_dimension_numbers<[1], [0], [0], [1], [0, 0, 1, 1], [], []>} : vector<32x256xf32>, vector<256x256xf32>, vector<32x256xf32> -> vector<32x256xf32>
    %71 = arith.addf %65, %70 : vector<32x256xf32>
    %cst_66 = arith.constant dense<0.000000e+00> : vector<256xf32>
    %72 = vector.multi_reduction <add>, %71, %cst_66 [0] : vector<32x256xf32> to vector<256xf32>
    %73 = vector.shape_cast %72 : vector<256xf32> to vector<1x256xf32>
    %74 = arith.mulf %71, %71 : vector<32x256xf32>
    %cst_67 = arith.constant dense<0.000000e+00> : vector<256xf32>
    %75 = vector.multi_reduction <add>, %74, %cst_67 [0] : vector<32x256xf32> to vector<256xf32>
    %76 = vector.shape_cast %75 : vector<256xf32> to vector<1x256xf32>
    %c0_68 = arith.constant 0 : index
    %c0_69 = arith.constant 0 : index
    %77 = vector.load %arg3[%c0_68, %c0_69] : memref<256x256xf32, #tpu.memory_space<vmem>>, vector<256x256xf32>
    %cst_70 = arith.constant dense<0.000000e+00> : vector<1x256xf32>
    %78 = tpu.matmul %73, %77, %cst_70 {dimension_numbers = #tpu.dot_dimension_numbers<[1], [0], [0], [1], [0, 0, 1, 1], [], []>} : vector<1x256xf32>, vector<256x256xf32>, vector<1x256xf32> -> vector<1x256xf32>
    %c0_71 = arith.constant 0 : index
    %c0_72 = arith.constant 0 : index
    %79 = vector.load %arg3[%c0_71, %c0_72] : memref<256x256xf32, #tpu.memory_space<vmem>>, vector<256x256xf32>
    %cst_73 = arith.constant dense<0.000000e+00> : vector<1x256xf32>
    %80 = tpu.matmul %76, %79, %cst_73 {dimension_numbers = #tpu.dot_dimension_numbers<[1], [0], [0], [1], [0, 0, 1, 1], [], []>} : vector<1x256xf32>, vector<256x256xf32>, vector<1x256xf32> -> vector<1x256xf32>
    %cst_74 = arith.constant 0.001953125 : f32
    %81 = vector.broadcast %cst_74 : f32 to vector<1x256xf32>
    %82 = arith.mulf %78, %81 : vector<1x256xf32>
    %cst_75 = arith.constant 0.001953125 : f32
    %83 = vector.broadcast %cst_75 : f32 to vector<1x256xf32>
    %84 = arith.mulf %80, %83 : vector<1x256xf32>
    %85 = arith.mulf %82, %82 : vector<1x256xf32>
    %86 = arith.subf %84, %85 : vector<1x256xf32>
    %c2_76 = arith.constant 2 : index
    %c0_77 = arith.constant 0 : index
    %87 = vector.load %arg2[%c2_76, %c0_77] : memref<4x256xf32, #tpu.memory_space<vmem>>, vector<1x256xf32>
    %c3_78 = arith.constant 3 : index
    %c0_79 = arith.constant 0 : index
    %88 = vector.load %arg2[%c3_78, %c0_79] : memref<4x256xf32, #tpu.memory_space<vmem>>, vector<1x256xf32>
    %cst_80 = arith.constant 9.99999974E-6 : f32
    %89 = vector.broadcast %cst_80 : f32 to vector<1x256xf32>
    %90 = arith.addf %86, %89 : vector<1x256xf32>
    %91 = math.rsqrt %90 : vector<1x256xf32>
    %92 = arith.mulf %87, %91 : vector<1x256xf32>
    %93 = arith.mulf %82, %92 : vector<1x256xf32>
    %94 = arith.subf %88, %93 : vector<1x256xf32>
    %95 = vector.broadcast %92 : vector<1x256xf32> to vector<32x256xf32>
    %96 = arith.mulf %71, %95 : vector<32x256xf32>
    %97 = vector.broadcast %94 : vector<1x256xf32> to vector<32x256xf32>
    %98 = arith.addf %96, %97 : vector<32x256xf32>
    %cst_81 = arith.constant 0.000000e+00 : f32
    %99 = vector.broadcast %cst_81 : f32 to vector<32x256xf32>
    %100 = arith.maximumf %98, %99 : vector<32x256xf32>
    %c0_82 = arith.constant 0 : index
    %c0_83 = arith.constant 0 : index
    %101 = vector.load %arg0[%c0_82, %c0_83] : memref<32x256xf32, #tpu.memory_space<vmem>>, vector<32x256xf32>
    %102 = arith.addf %100, %101 : vector<32x256xf32>
    %cst_84 = arith.constant 0.000000e+00 : f32
    %103 = vector.broadcast %cst_84 : f32 to vector<32x256xf32>
    %104 = arith.maximumf %102, %103 : vector<32x256xf32>
    %c0_85 = arith.constant 0 : index
    %c0_86 = arith.constant 0 : index
    %105 = vector.load %arg4[%c0_85, %c0_86] : memref<32x256xf32, #tpu.memory_space<vmem>>, vector<32x256xf32>
    tpu.vector_store %arg4[%c0_85, %c0_86], %104 {strides = array<i32>} : memref<32x256xf32, #tpu.memory_space<vmem>>, vector<32x256xf32>,
    return
  }
}

</mosaic_0001>

<llo_original>
// kernel: tile.23
$region0: #{tile.23}
  #allocation0 [shape = 's32[1]{0}', space=sflag, size = 0x4, scoped, tag = 'scoped memory for tile.23']
  %s0 = inlined_call_operand.vmem [shape: f32[16], index: 0, kind: input, shape index: {}]
  %s1 = inlined_call_operand.vmem [shape: f32[16,16], index: 1, kind: output, shape index: {}]
  // Predicated region
  $region2: #{tile.23} parent=0 // pred_check
    _
  $region3: #{tile.23} parent=0 // pred_check_branch
    %3 = sbr.rel (0) target = $region5
  $region4: #{tile.23} parent=0 // pred_region
    _
  $region5: #{tile.23} parent=0 // pred_fallthru
    _
  %v4 = vld [vmem:[%s0] ss:$0 sm:$0xff]
  %5 = vst [vmem:[%s1] sm:$0xff] %v4
  %s6 = scalar_lea.vmem %s1, 8
  %7 = vst [vmem:[%s6] sm:$0xff] %v4

// kernel: tile.36
$region0: #{tile.36}
  %s0 = inlined_call_operand.vmem [shape: f32[16,16], index: 0, kind: input, shape index: {}]
  %s1 = inlined_call_operand.vmem [shape: f32[1,256], index: 1, kind: output, shape index: {}]
  $region1: #{tile.36} parent=0
    #allocation0 [shape = 'u8[8192]{0}', space=vmem, size = 0x2000, scoped, tag = 'scoped mem for output reshape']
    %s2 = smov 3
    %v3 = vld [vmem:[%s0] ss:$8 sm:%s2]
    %vm4 = vcmask 130048
    %5 = vst.msk [vmem:[#allocation0] ss:$8 sm:$0x3] %vm4, %v3
    %s6 = scalar_lea.vmem %s0, 7
    %s7 = smov 3
    %v8 = vld [vmem:[%s6] ss:$8 sm:%s7]
    %9 = vrot.lane.b32.xlu0 %v8, 112
    %v10 = vpop.permute.xlu0 %9
    %vm11 = vcmask 1048448
    %12 = vst.msk [vmem:[#allocation0] ss:$8 sm:$0x3] %vm11, %v10
    %s13 = scalar_lea.vmem %s0, 6
    %s14 = smov 3
    %v15 = vld [vmem:[%s13] ss:$8 sm:%s14]
    %16 = vrot.lane.b32.xlu0 %v15, 96
    %v17 = vpop.permute.xlu0 %16
    %vm18 = vcmask 917248
    %19 = vst.msk [vmem:[#allocation0] ss:$8 sm:$0x3] %vm18, %v17
    %s20 = scalar_lea.vmem %s0, 5
    %s21 = smov 3
    %v22 = vld [vmem:[%s20] ss:$8 sm:%s21]
    %23 = vrot.lane.b32.xlu0 %v22, 80
    %v24 = vpop.permute.xlu0 %23
    %vm25 = vcmask 786048
    %26 = vst.msk [vmem:[#allocation0] ss:$8 sm:$0x3] %vm25, %v24
    %s27 = scalar_lea.vmem %s0, 4
    %s28 = smov 3
    %v29 = vld [vmem:[%s27] ss:$8 sm:%s28]
    %30 = vrot.lane.b32.xlu0 %v29, 64
    %v31 = vpop.permute.xlu0 %30
    %vm32 = vcmask 654848
    %33 = vst.msk [vmem:[#allocation0] ss:$8 sm:$0x3] %vm32, %v31
    %s34 = scalar_lea.vmem %s0, 3
    %s35 = smov 3
    %v36 = vld [vmem:[%s34] ss:$8 sm:%s35]
    %37 = vrot.lane.b32.xlu0 %v36, 48
    %v38 = vpop.permute.xlu0 %37
    %vm39 = vcmask 523648
    %40 = vst.msk [vmem:[#allocation0] ss:$8 sm:$0x3] %vm39, %v38
    %s41 = scalar_lea.vmem %s0, 2
    %s42 = smov 3
    %v43 = vld [vmem:[%s41] ss:$8 sm:%s42]
    %44 = vrot.lane.b32.xlu0 %v43, 32
    %v45 = vpop.permute.xlu0 %44
    %vm46 = vcmask 392448
    %47 = vst.msk [vmem:[#allocation0] ss:$8 sm:$0x3] %vm46, %v45
    %s48 = scalar_lea.vmem %s0, 1
    %s49 = smov 3
    %v50 = vld [vmem:[%s48] ss:$8 sm:%s49]
    %51 = vrot.lane.b32.xlu0 %v50, 16
    %v52 = vpop.permute.xlu0 %51
    %vm53 = vcmask 261248
    %54 = vst.msk [vmem:[#allocation0] ss:$8 sm:$0x3] %vm53, %v52
    %s56 = sshllo.u32 0, 1
    %v58 = vld [vmem:[#allocation0] sm:%s56]
    %s59 = sshllo.u32 0, 1
    %60 = vst [vmem:[%s1] sm:%s59] %v58
    %s61 = scalar_lea.vmem [#allocation0], 8
    %v62 = vld [vmem:[%s61] sm:%s56]
    %s63 = sshllo.u32 0, 1
    %s64 = scalar_lea.vmem %s1, 1
    %65 = vst [vmem:[%s64] sm:%s63] %v62

// kernel: residual_block.1
$region0: #{residual_block.1}
  #allocation0 [shape = 'u32[]', space=smem, size = 0x4, offset = 0x4, fixed_abs, tag = 'smem constant byte address 0x4 - core index']
  #allocation1 [shape = 'u32[144,128]{1,0:T(1,128)}', space=vmem, size = 0x12000, scoped, tag = 'internal scratch']
  #allocation2 [shape = 'f32[2,18,256]{2,1,0:T(8,128)}', space=vmem, size = 0xc000, scoped, tag = 'scratch operand']
  %s0 = inlined_call_operand.vmem [shape: f32[32,256], index: 0, kind: input, shape index: {}]
  %s1 = inlined_call_operand.vmem [shape: f32[6,256,256], index: 1, kind: input, shape index: {}]
  %s2 = inlined_call_operand.vmem [shape: f32[4,256], index: 2, kind: input, shape index: {}]
  %s3 = inlined_call_operand.vmem [shape: f32[256,256], index: 3, kind: input, shape index: {}]
  %s4 = inlined_call_operand.vmem [shape: f32[32,256], index: 4, kind: output, shape index: {}]
  %s5 = sld [smem:[#allocation0]]
  $region26: #{residual_block.1} parent=0
    _
  %s7 = ssub.s32 1, %s5
  %s8 = scalar_select 0, %s7, %s5
  // Predicated region
  $region2: #{residual_block.1} parent=0 // pred_check
    _
  $region3: #{residual_block.1} parent=0 // pred_check_branch
    %10 = sbr.rel (0) target = $region5
  $region4: #{residual_block.1} parent=0 // pred_region
    _
  $region5: #{residual_block.1} parent=0 // pred_fallthru
    _
  // Predicated region
  $region6: #{residual_block.1} parent=0 // pred_check
    _
  $region7: #{residual_block.1} parent=0 // pred_check_branch
    %12 = sbr.rel (0) target = $region9
  $region8: #{residual_block.1} parent=0 // pred_region
    _
  $region9: #{residual_block.1} parent=0 // pred_fallthru
    _
  // Predicated region
  $region10: #{residual_block.1} parent=0 // pred_check
    _
  $region11: #{residual_block.1} parent=0 // pred_check_branch
    %14 = sbr.rel (0) target = $region13
  $region12: #{residual_block.1} parent=0 // pred_region
    _
  $region13: #{residual_block.1} parent=0 // pred_fallthru
    _
  // Predicated region
  $region14: #{residual_block.1} parent=0 // pred_check
    _
  $region15: #{residual_block.1} parent=0 // pred_check_branch
    %16 = sbr.rel (0) target = $region17
  $region16: #{residual_block.1} parent=0 // pred_region
    _
  $region17: #{residual_block.1} parent=0 // pred_fallthru
    _
  %v17 = vlaneseq
  %vm18 = vcmp.ge.s32.totalorder %v17, 0
  %vm19 = vcmp.lt.s32.totalorder %v17, 256
  %vm20 = vmand %vm18, %vm19
  %21 = vst.msk [vmem:[#allocation2] ss:$8 sm:$0x3] %vm20, 0.0
  %22 = vst.msk [vmem:[#allocation2] ss:$8 sm:$0x0] %vm20, 0.0
  %s23 = scalar_lea.vmem [#allocation2], 48
  %24 = vst.msk [vmem:[%s23] ss:$8 sm:$0x3] %vm20, 0.0
  %25 = vst.msk [vmem:[%s23] ss:$8 sm:$0x0] %vm20, 0.0
  %s26 = scalar_lea.vmem [#allocation2], 33
  %27 = vst.msk [vmem:[%s26] ss:$8 sm:$0x3] %vm20, 0.0
  %28 = vst.msk [vmem:[%s26] ss:$8 sm:$0x0] %vm20, 0.0
  %s29 = scalar_lea.vmem [#allocation2], 81
  %30 = vst.msk [vmem:[%s29] ss:$8 sm:$0x3] %vm20, 0.0
  %31 = vst.msk [vmem:[%s29] ss:$8 sm:$0x0] %vm20, 0.0
  %v32 = vld [vmem:[%s0] sm:$0xff]
  %v33 = vld [vmem:[%s0 + $0x8] sm:$0xff]
  %v34 = vld [vmem:[%s0 + $0x10] sm:$0xff]
  %v35 = vld [vmem:[%s0 + $0x18] sm:$0xff]
  %v36 = vld [vmem:[%s0 + $0x20] sm:$0xff]
  %v37 = vld [vmem:[%s0 + $0x28] sm:$0xff]
  %v38 = vld [vmem:[%s0 + $0x30] sm:$0xff]
  %v39 = vld [vmem:[%s0 + $0x38] sm:$0xff]
  %vm48 = vcmask 1040384
  %v49 = vrot.slane %v32, 7
  %v50 = vrot.slane %v33, 7
  %v51 = vrot.slane %v34, 7
  %v52 = vsel %vm48, %v49, %v51
  %v53 = vrot.slane %v35, 7
  %v54 = vsel %vm48, %v50, %v53
  %v55 = vrot.slane %v36, 7
  %v56 = vrot.slane %v37, 7
  %v57 = vrot.slane %v38, 7
  %v58 = vsel %vm48, %v55, %v57
  %v59 = vrot.slane %v39, 7
  %v60 = vsel %vm48, %v56, %v59
  %73 = vst [vmem:[#allocation2] sm:$0xfe] %v49
  %74 = vst [vmem:[#allocation2 + $0x8] sm:$0xfe] %v50
  %75 = vst [vmem:[#allocation2 + $0x10] sm:$0xff] %v52
  %76 = vst [vmem:[#allocation2 + $0x18] sm:$0xff] %v54
  %77 = vst [vmem:[#allocation2 + $0x20] sm:$0x1] %v51
  %78 = vst [vmem:[#allocation2 + $0x28] sm:$0x1] %v53
  %79 = vst [vmem:[#allocation2 + $0x30] sm:$0xfe] %v55
  %80 = vst [vmem:[#allocation2 + $0x38] sm:$0xfe] %v56
  %81 = vst [vmem:[#allocation2 + $0x40] sm:$0xff] %v58
  %82 = vst [vmem:[#allocation2 + $0x48] sm:$0xff] %v60
  %83 = vst [vmem:[#allocation2 + $0x50] sm:$0x1] %v57
  %84 = vst [vmem:[#allocation2 + $0x58] sm:$0x1] %v59
  %v85 = vld [vmem:[#allocation2] sm:$0xff]
  %v86 = vld [vmem:[#allocation2 + $0x8] sm:$0xff]
  %v87 = vld [vmem:[#allocation2 + $0x10] sm:$0xff]
  %v88 = vld [vmem:[#allocation2 + $0x18] sm:$0xff]
  %v89 = vld [vmem:[#allocation2 + $0x30] sm:$0xff]
  %v90 = vld [vmem:[#allocation2 + $0x38] sm:$0xff]
  %v91 = vld [vmem:[#allocation2 + $0x40] sm:$0xff]
  %v92 = vld [vmem:[#allocation2 + $0x48] sm:$0xff]
  %v93 = vld [vmem:[%s1] sm:$0xff]
  %v94 = vld [vmem:[%s1 + $0x8] sm:$0xff]
  %v95 = vld [vmem:[%s1 + $0x10] sm:$0xff]
  %v96 = vld [vmem:[%s1 + $0x18] sm:$0xff]
  %v97 = vld [vmem:[%s1 + $0x20] sm:$0xff]
  %v98 = vld [vmem:[%s1 + $0x28] sm:$0xff]
  %v99 = vld [vmem:[%s1 + $0x30] sm:$0xff]
  %v100 = vld [vmem:[%s1 + $0x38] sm:$0xff]
  %v101 = vld [vmem:[%s1 + $0x40] sm:$0xff]
  %v102 = vld [vmem:[%s1 + $0x48] sm:$0xff]
  %v103 = vld [vmem:[%s1 + $0x50] sm:$0xff]
  %v104 = vld [vmem:[%s1 + $0x58] sm:$0xff]
  %v105 = vld [vmem:[%s1 + $0x60] sm:$0xff]
  %v106 = vld [vmem:[%s1 + $0x68] sm:$0xff]
  %v107 = vld [vmem:[%s1 + $0x70] sm:$0xff]
  %v108 = vld [vmem:[%s1 + $0x78] sm:$0xff]
  %v109 = vld [vmem:[%s1 + $0x80] sm:$0xff]
  %v110 = vld [vmem:[%s1 + $0x88] sm:$0xff]
  %v111 = vld [vmem:[%s1 + $0x90] sm:$0xff]
  %v112 = vld [vmem:[%s1 + $0x98] sm:$0xff]
  %v113 = vld [vmem:[%s1 + $0xa0] sm:$0xff]
  %v114 = vld [vmem:[%s1 + $0xa8] sm:$0xff]
  %v115 = vld [vmem:[%s1 + $0xb0] sm:$0xff]
  %v116 = vld [vmem:[%s1 + $0xb8] sm:$0xff]
  %v117 = vld [vmem:[%s1 + $0xc0] sm:$0xff]
  %v118 = vld [vmem:[%s1 + $0xc8] sm:$0xff]
  %v119 = vld [vmem:[%s1 + $0xd0] sm:$0xff]
  %v120 = vld [vmem:[%s1 + $0xd8] sm:$0xff]
  %v121 = vld [vmem:[%s1 + $0xe0] sm:$0xff]
  %v122 = vld [vmem:[%s1 + $0xe8] sm:$0xff]
  %v123 = vld [vmem:[%s1 + $0xf0] sm:$0xff]
  %v124 = vld [vmem:[%s1 + $0xf8] sm:$0xff]
  %v125 = vld [vmem:[%s1 + $0x100] sm:$0xff]
  %v126 = vld [vmem:[%s1 + $0x108] sm:$0xff]
  %v127 = vld [vmem:[%s1 + $0x110] sm:$0xff]
  %v128 = vld [vmem:[%s1 + $0x118] sm:$0xff]
  %v129 = vld [vmem:[%s1 + $0x120] sm:$0xff]
  %v130 = vld [vmem:[%s1 + $0x128] sm:$0xff]
  %v131 = vld [vmem:[%s1 + $0x130] sm:$0xff]
  %v132 = vld [vmem:[%s1 + $0x138] sm:$0xff]
  %v133 = vld [vmem:[%s1 + $0x140] sm:$0xff]
  %v134 = vld [vmem:[%s1 + $0x148] sm:$0xff]
  %v135 = vld [vmem:[%s1 + $0x150] sm:$0xff]
  %v136 = vld [vmem:[%s1 + $0x158] sm:$0xff]
  %v137 = vld [vmem:[%s1 + $0x160] sm:$0xff]
  %v138 = vld [vmem:[%s1 + $0x168] sm:$0xff]
  %v139 = vld [vmem:[%s1 + $0x170] sm:$0xff]
  %v140 = vld [vmem:[%s1 + $0x178] sm:$0xff]
  %v141 = vld [vmem:[%s1 + $0x180] sm:$0xff]
  %v142 = vld [vmem:[%s1 + $0x188] sm:$0xff]
  %v143 = vld [vmem:[%s1 + $0x190] sm:$0xff]
  %v144 = vld [vmem:[%s1 + $0x198] sm:$0xff]
  %v145 = vld [vmem:[%s1 + $0x1a0] sm:$0xff]
  %v146 = vld [vmem:[%s1 + $0x1a8] sm:$0xff]
  %v147 = vld [vmem:[%s1 + $0x1b0] sm:$0xff]
  %v148 = vld [vmem:[%s1 + $0x1b8] sm:$0xff]
  %v149 = vld [vmem:[%s1 + $0x1c0] sm:$0xff]
  %v150 = vld [vmem:[%s1 + $0x1c8] sm:$0xff]
  %v151 = vld [vmem:[%s1 + $0x1d0] sm:$0xff]
  %v152 = vld [vmem:[%s1 + $0x1d8] sm:$0xff]
  %v153 = vld [vmem:[%s1 + $0x1e0] sm:$0xff]
  %v154 = vld [vmem:[%s1 + $0x1e8] sm:$0xff]
  %v155 = vld [vmem:[%s1 + $0x1f0] sm:$0xff]
  %v156 = vld [vmem:[%s1 + $0x1f8] sm:$0xff]
  %v157 = vld [vmem:[#allocation2] sm:$0xfe]
  %v158 = vld [vmem:[#allocation2 + $0x8] sm:$0xfe]
  %v159 = vld [vmem:[#allocation2 + $0x20] sm:$0x1]
  %v160 = vld [vmem:[#allocation2 + $0x28] sm:$0x1]
  %v161 = vld [vmem:[#allocation2 + $0x30] sm:$0xfe]
  %v162 = vld [vmem:[#allocation2 + $0x38] sm:$0xfe]
  %v163 = vld [vmem:[#allocation2 + $0x50] sm:$0x1]
  %v164 = vld [vmem:[#allocation2 + $0x58] sm:$0x1]
  %vm177 = vcmask 1046528
  %v178 = vrot.slane %v157, 1
  %v179 = vrot.slane %v87, 1
  %v180 = vsel %vm177, %v178, %v179
  %v181 = vrot.slane %v158, 1
  %v182 = vrot.slane %v88, 1
  %v183 = vsel %vm177, %v181, %v182
  %v184 = vrot.slane %v159, 1
  %v185 = vsel %vm177, %v179, %v184
  %v186 = vrot.slane %v160, 1
  %v187 = vsel %vm177, %v182, %v186
  %v188 = vrot.slane %v161, 1
  %v189 = vrot.slane %v91, 1
  %v190 = vsel %vm177, %v188, %v189
  %v191 = vrot.slane %v162, 1
  %v192 = vrot.slane %v92, 1
  %v193 = vsel %vm177, %v191, %v192
  %v194 = vrot.slane %v163, 1
  %v195 = vsel %vm177, %v189, %v194
  %v196 = vrot.slane %v164, 1
  %v197 = vsel %vm177, %v192, %v196
  %s206 = scalar_lea.vmem %s1, 512
  %v207 = vld [vmem:[%s206] sm:$0xff]
  %v208 = vld [vmem:[%s206 + $0x8] sm:$0xff]
  %v209 = vld [vmem:[%s206 + $0x10] sm:$0xff]
  %v210 = vld [vmem:[%s206 + $0x18] sm:$0xff]
  %v211 = vld [vmem:[%s206 + $0x20] sm:$0xff]
  %v212 = vld [vmem:[%s206 + $0x28] sm:$0xff]
  %v213 = vld [vmem:[%s206 + $0x30] sm:$0xff]
  %v214 = vld [vmem:[%s206 + $0x38] sm:$0xff]
  %v215 = vld [vmem:[%s206 + $0x40] sm:$0xff]
  %v216 = vld [vmem:[%s206 + $0x48] sm:$0xff]
  %v217 = vld [vmem:[%s206 + $0x50] sm:$0xff]
  %v218 = vld [vmem:[%s206 + $0x58] sm:$0xff]
  %v219 = vld [vmem:[%s206 + $0x60] sm:$0xff]
  %v220 = vld [vmem:[%s206 + $0x68] sm:$0xff]
  %v221 = vld [vmem:[%s206 + $0x70] sm:$0xff]
  %v222 = vld [vmem:[%s206 + $0x78] sm:$0xff]
  %v223 = vld [vmem:[%s206 + $0x80] sm:$0xff]
  %v224 = vld [vmem:[%s206 + $0x88] sm:$0xff]
  %v225 = vld [vmem:[%s206 + $0x90] sm:$0xff]
  %v226 = vld [vmem:[%s206 + $0x98] sm:$0xff]
  %v227 = vld [vmem:[%s206 + $0xa0] sm:$0xff]
  %v228 = vld [vmem:[%s206 + $0xa8] sm:$0xff]
  %v229 = vld [vmem:[%s206 + $0xb0] sm:$0xff]
  %v230 = vld [vmem:[%s206 + $0xb8] sm:$0xff]
  %v231 = vld [vmem:[%s206 + $0xc0] sm:$0xff]
  %v232 = vld [vmem:[%s206 + $0xc8] sm:$0xff]
  %v233 = vld [vmem:[%s206 + $0xd0] sm:$0xff]
  %v234 = vld [vmem:[%s206 + $0xd8] sm:$0xff]
  %v235 = vld [vmem:[%s206 + $0xe0] sm:$0xff]
  %v236 = vld [vmem:[%s206 + $0xe8] sm:$0xff]
  %v237 = vld [vmem:[%s206 + $0xf0] sm:$0xff]
  %v238 = vld [vmem:[%s206 + $0xf8] sm:$0xff]
  %v239 = vld [vmem:[%s206 + $0x100] sm:$0xff]
  %v240 = vld [vmem:[%s206 + $0x108] sm:$0xff]
  %v241 = vld [vmem:[%s206 + $0x110] sm:$0xff]
  %v242 = vld [vmem:[%s206 + $0x118] sm:$0xff]
  %v243 = vld [vmem:[%s206 + $0x120] sm:$0xff]
  %v244 = vld [vmem:[%s206 + $0x128] sm:$0xff]
  %v245 = vld [vmem:[%s206 + $0x130] sm:$0xff]
  %v246 = vld [vmem:[%s206 + $0x138] sm:$0xff]
  %v247 = vld [vmem:[%s206 + $0x140] sm:$0xff]
  %v248 = vld [vmem:[%s206 + $0x148] sm:$0xff]
  %v249 = vld [vmem:[%s206 + $0x150] sm:$0xff]
  %v250 = vld [vmem:[%s206 + $0x158] sm:$0xff]
  %v251 = vld [vmem:[%s206 + $0x160] sm:$0xff]
  %v252 = vld [vmem:[%s206 + $0x168] sm:$0xff]
  %v253 = vld [vmem:[%s206 + $0x170] sm:$0xff]
  %v254 = vld [vmem:[%s206 + $0x178] sm:$0xff]
  %v255 = vld [vmem:[%s206 + $0x180] sm:$0xff]
  %v256 = vld [vmem:[%s206 + $0x188] sm:$0xff]
  %v257 = vld [vmem:[%s206 + $0x190] sm:$0xff]
  %v258 = vld [vmem:[%s206 + $0x198] sm:$0xff]
  %v259 = vld [vmem:[%s206 + $0x1a0] sm:$0xff]
  %v260 = vld [vmem:[%s206 + $0x1a8] sm:$0xff]
  %v261 = vld [vmem:[%s206 + $0x1b0] sm:$0xff]
  %v262 = vld [vmem:[%s206 + $0x1b8] sm:$0xff]
  %v263 = vld [vmem:[%s206 + $0x1c0] sm:$0xff]
  %v264 = vld [vmem:[%s206 + $0x1c8] sm:$0xff]
  %v265 = vld [vmem:[%s206 + $0x1d0] sm:$0xff]
  %v266 = vld [vmem:[%s206 + $0x1d8] sm:$0xff]
  %v267 = vld [vmem:[%s206 + $0x1e0] sm:$0xff]
  %v268 = vld [vmem:[%s206 + $0x1e8] sm:$0xff]
  %v269 = vld [vmem:[%s206 + $0x1f0] sm:$0xff]
  %v270 = vld [vmem:[%s206 + $0x1f8] sm:$0xff]
  %271 = vmatprep.subr.mxu0 %v208
  %272 = vmatpush1.msra.mxu0 %v207
  %273 = vmatprep.subr.mxu0 %v210
  %274 = vmatpush1.msra.mxu0 %v209
  %275 = vmatprep.subr.mxu0 %v212
  %276 = vmatpush1.msra.mxu0 %v211
  %277 = vmatprep.subr.mxu0 %v214
  %278 = vmatpush1.msra.mxu0 %v213
  %279 = vmatprep.subr.mxu0 %v216
  %280 = vmatpush1.msra.mxu0 %v215
  %281 = vmatprep.subr.mxu0 %v218
  %282 = vmatpush1.msra.mxu0 %v217
  %283 = vmatprep.subr.mxu0 %v220
  %284 = vmatpush1.msra.mxu0 %v219
  %285 = vmatprep.subr.mxu0 %v222
  %286 = vmatpush1.msra.mxu0 %v221
  %287 = vmatprep.subr.mxu0 %v224
  %288 = vmatpush1.msra.mxu0 %v223
  %289 = vmatprep.subr.mxu0 %v226
  %290 = vmatpush1.msra.mxu0 %v225
  %291 = vmatprep.subr.mxu0 %v228
  %292 = vmatpush1.msra.mxu0 %v227
  %293 = vmatprep.subr.mxu0 %v230
  %294 = vmatpush1.msra.mxu0 %v229
  %295 = vmatprep.subr.mxu0 %v232
  %296 = vmatpush1.msra.mxu0 %v231
  %297 = vmatprep.subr.mxu0 %v234
  %298 = vmatpush1.msra.mxu0 %v233
  %299 = vmatprep.subr.mxu0 %v236
  %300 = vmatpush1.msra.mxu0 %v235
  %301 = vmatprep.subr.mxu0 %v238
  %302 = vmatpush1.msra.mxu0 %v237
  %303 = vmatprep.subr.mxu0 %v240
  %304 = vmatpush1.msra.mxu0 %v239
  %305 = vmatprep.subr.mxu0 %v242
  %306 = vmatpush1.msra.mxu0 %v241
  %307 = vmatprep.subr.mxu0 %v244
  %308 = vmatpush1.msra.mxu0 %v243
  %309 = vmatprep.subr.mxu0 %v246
  %310 = vmatpush1.msra.mxu0 %v245
  %311 = vmatprep.subr.mxu0 %v248
  %312 = vmatpush1.msra.mxu0 %v247
  %313 = vmatprep.subr.mxu0 %v250
  %314 = vmatpush1.msra.mxu0 %v249
  %315 = vmatprep.subr.mxu0 %v252
  %316 = vmatpush1.msra.mxu0 %v251
  %317 = vmatprep.subr.mxu0 %v254
  %318 = vmatpush1.msra.mxu0 %v253
  %319 = vmatprep.subr.mxu0 %v256
  %320 = vmatpush1.msra.mxu0 %v255
  %321 = vmatprep.subr.mxu0 %v258
  %322 = vmatpush1.msra.mxu0 %v257
  %323 = vmatprep.subr.mxu0 %v260
  %324 = vmatpush1.msra.mxu0 %v259
  %325 = vmatprep.subr.mxu0 %v262
  %326 = vmatpush1.msra.mxu0 %v261
  %327 = vmatprep.subr.mxu0 %v264
  %328 = vmatpush1.msra.mxu0 %v263
  %329 = vmatprep.subr.mxu0 %v266
  %330 = vmatpush1.msra.mxu0 %v265
  %331 = vmatprep.subr.mxu0 %v268
  %332 = vmatpush1.msra.mxu0 %v267
  %333 = vmatprep.subr.mxu0 %v270
  %334 = vmatpush1.msra.mxu0 %v269
  %335 = vmatprep.mubr.f32.mxu0 %v183
  %336 = vmatmul.mubr.f32.gmra.mrb[0].mxu0 %v180
  %v337 = vpop.f32.mrb[0].mxu0
  %v338 = vadd.f32 0.0, %v337
  %v339 = vpop.f32.mrb[0].mxu0
  %v340 = vadd.f32 0.0, %v339
  %341 = vmatprep.mubr.f32.mxu0 %v187
  %342 = vmatmul.mubr.f32.gmra.mrb[0].mxu0 %v185
  %v343 = vpop.f32.mrb[0].mxu0
  %v344 = vadd.f32 0.0, %v343
  %v345 = vpop.f32.mrb[0].mxu0
  %v346 = vadd.f32 0.0, %v345
  %347 = vmatprep.mubr.f32.mxu0 %v193
  %348 = vmatmul.mubr.f32.gmra.mrb[0].mxu0 %v190
  %v349 = vpop.f32.mrb[0].mxu0
  %v350 = vadd.f32 0.0, %v349
  %v351 = vpop.f32.mrb[0].mxu0
  %v352 = vadd.f32 0.0, %v351
  %353 = vmatprep.mubr.f32.mxu0 %v197
  %354 = vmatmul.mubr.f32.gmra.mrb[0].mxu0 %v195
  %v355 = vpop.f32.mrb[0].mxu0
  %v356 = vadd.f32 0.0, %v355
  %v357 = vpop.f32.mrb[0].mxu0
  %v358 = vadd.f32 0.0, %v357
  %359 = vdwg.mxu0
  %360 = vmatprep.subr.mxu0 %v94
  %361 = vmatpush1.msra.mxu0 %v93
  %362 = vmatprep.subr.mxu0 %v96
  %363 = vmatpush1.msra.mxu0 %v95
  %364 = vmatprep.subr.mxu0 %v98
  %365 = vmatpush1.msra.mxu0 %v97
  %366 = vmatprep.subr.mxu0 %v100
  %367 = vmatpush1.msra.mxu0 %v99
  %368 = vmatprep.subr.mxu0 %v102
  %369 = vmatpush1.msra.mxu0 %v101
  %370 = vmatprep.subr.mxu0 %v104
  %371 = vmatpush1.msra.mxu0 %v103
  %372 = vmatprep.subr.mxu0 %v106
  %373 = vmatpush1.msra.mxu0 %v105
  %374 = vmatprep.subr.mxu0 %v108
  %375 = vmatpush1.msra.mxu0 %v107
  %376 = vmatprep.subr.mxu0 %v110
  %377 = vmatpush1.msra.mxu0 %v109
  %378 = vmatprep.subr.mxu0 %v112
  %379 = vmatpush1.msra.mxu0 %v111
  %380 = vmatprep.subr.mxu0 %v114
  %381 = vmatpush1.msra.mxu0 %v113
  %382 = vmatprep.subr.mxu0 %v116
  %383 = vmatpush1.msra.mxu0 %v115
  %384 = vmatprep.subr.mxu0 %v118
  %385 = vmatpush1.msra.mxu0 %v117
  %386 = vmatprep.subr.mxu0 %v120
  %387 = vmatpush1.msra.mxu0 %v119
  %388 = vmatprep.subr.mxu0 %v122
  %389 = vmatpush1.msra.mxu0 %v121
  %390 = vmatprep.subr.mxu0 %v124
  %391 = vmatpush1.msra.mxu0 %v123
  %392 = vmatprep.subr.mxu0 %v126
  %393 = vmatpush1.msra.mxu0 %v125
  %394 = vmatprep.subr.mxu0 %v128
  %395 = vmatpush1.msra.mxu0 %v127
  %396 = vmatprep.subr.mxu0 %v130
  %397 = vmatpush1.msra.mxu0 %v129
  %398 = vmatprep.subr.mxu0 %v132
  %399 = vmatpush1.msra.mxu0 %v131
  %400 = vmatprep.subr.mxu0 %v134
  %401 = vmatpush1.msra.mxu0 %v133
  %402 = vmatprep.subr.mxu0 %v136
  %403 = vmatpush1.msra.mxu0 %v135
  %404 = vmatprep.subr.mxu0 %v138
  %405 = vmatpush1.msra.mxu0 %v137
  %406 = vmatprep.subr.mxu0 %v140
  %407 = vmatpush1.msra.mxu0 %v139
  %408 = vmatprep.subr.mxu0 %v142
  %409 = vmatpush1.msra.mxu0 %v141
  %410 = vmatprep.subr.mxu0 %v144
  %411 = vmatpush1.msra.mxu0 %v143
  %412 = vmatprep.subr.mxu0 %v146
  %413 = vmatpush1.msra.mxu0 %v145
  %414 = vmatprep.subr.mxu0 %v148
  %415 = vmatpush1.msra.mxu0 %v147
  %416 = vmatprep.subr.mxu0 %v150
  %417 = vmatpush1.msra.mxu0 %v149
  %418 = vmatprep.subr.mxu0 %v152
  %419 = vmatpush1.msra.mxu0 %v151
  %420 = vmatprep.subr.mxu0 %v154
  %421 = vmatpush1.msra.mxu0 %v153
  %422 = vmatprep.subr.mxu0 %v156
  %423 = vmatpush1.msra.mxu0 %v155
  %424 = vmatprep.mubr.f32.mxu0 %v86
  %425 = vmatmul.mubr.f32.gmra.mrb[0].mxu0 %v85
  %v426 = vpop.f32.mrb[0].mxu0
  %v427 = vadd.f32 %v338, %v426
  %v428 = vpop.f32.mrb[0].mxu0
  %v429 = vadd.f32 %v340, %v428
  %430 = vmatprep.mubr.f32.mxu0 %v88
  %431 = vmatmul.mubr.f32.gmra.mrb[0].mxu0 %v87
  %v432 = vpop.f32.mrb[0].mxu0
  %v433 = vadd.f32 %v344, %v432
  %v434 = vpop.f32.mrb[0].mxu0
  %v435 = vadd.f32 %v346, %v434
  %436 = vmatprep.mubr.f32.mxu0 %v90
  %437 = vmatmul.mubr.f32.gmra.mrb[0].mxu0 %v89
  %v438 = vpop.f32.mrb[0].mxu0
  %v439 = vadd.f32 %v350, %v438
  %v440 = vpop.f32.mrb[0].mxu0
  %v441 = vadd.f32 %v352, %v440
  %442 = vmatprep.mubr.f32.mxu0 %v92
  %443 = vmatmul.mubr.f32.gmra.mrb[0].mxu0 %v91
  %v444 = vpop.f32.mrb[0].mxu0
  %v445 = vadd.f32 %v356, %v444
  %v446 = vpop.f32.mrb[0].mxu0
  %v447 = vadd.f32 %v358, %v446
  %448 = vdwg.mxu0
  %v449 = vld [vmem:[#allocation2] sm:$0xfc]
  %v450 = vld [vmem:[#allocation2 + $0x8] sm:$0xfc]
  %v451 = vld [vmem:[#allocation2 + $0x20] sm:$0x3]
  %v452 = vld [vmem:[#allocation2 + $0x28] sm:$0x3]
  %v453 = vld [vmem:[#allocation2 + $0x30] sm:$0xfc]
  %v454 = vld [vmem:[#allocation2 + $0x38] sm:$0xfc]
  %v455 = vld [vmem:[#allocation2 + $0x50] sm:$0x3]
  %v456 = vld [vmem:[#allocation2 + $0x58] sm:$0x3]
  %vm465 = vcmask 1045504
  %v466 = vrot.slane %v449, 2
  %v467 = vrot.slane %v87, 2
  %v468 = vsel %vm465, %v466, %v467
  %v469 = vrot.slane %v450, 2
  %v470 = vrot.slane %v88, 2
  %v471 = vsel %vm465, %v469, %v470
  %v472 = vrot.slane %v451, 2
  %v473 = vsel %vm465, %v467, %v472
  %v474 = vrot.slane %v452, 2
  %v475 = vsel %vm465, %v470, %v474
  %v476 = vrot.slane %v453, 2
  %v477 = vrot.slane %v91, 2
  %v478 = vsel %vm465, %v476, %v477
  %v479 = vrot.slane %v454, 2
  %v480 = vrot.slane %v92, 2
  %v481 = vsel %vm465, %v479, %v480
  %v482 = vrot.slane %v455, 2
  %v483 = vsel %vm465, %v477, %v482
  %v484 = vrot.slane %v456, 2
  %v485 = vsel %vm465, %v480, %v484
  %s494 = scalar_lea.vmem %s1, 1024
  %v495 = vld [vmem:[%s494] sm:$0xff]
  %v496 = vld [vmem:[%s494 + $0x8] sm:$0xff]
  %v497 = vld [vmem:[%s494 + $0x10] sm:$0xff]
  %v498 = vld [vmem:[%s494 + $0x18] sm:$0xff]
  %v499 = vld [vmem:[%s494 + $0x20] sm:$0xff]
  %v500 = vld [vmem:[%s494 + $0x28] sm:$0xff]
  %v501 = vld [vmem:[%s494 + $0x30] sm:$0xff]
  %v502 = vld [vmem:[%s494 + $0x38] sm:$0xff]
  %v503 = vld [vmem:[%s494 + $0x40] sm:$0xff]
  %v504 = vld [vmem:[%s494 + $0x48] sm:$0xff]
  %v505 = vld [vmem:[%s494 + $0x50] sm:$0xff]
  %v506 = vld [vmem:[%s494 + $0x58] sm:$0xff]
  %v507 = vld [vmem:[%s494 + $0x60] sm:$0xff]
  %v508 = vld [vmem:[%s494 + $0x68] sm:$0xff]
  %v509 = vld [vmem:[%s494 + $0x70] sm:$0xff]
  %v510 = vld [vmem:[%s494 + $0x78] sm:$0xff]
  %v511 = vld [vmem:[%s494 + $0x80] sm:$0xff]
  %v512 = vld [vmem:[%s494 + $0x88] sm:$0xff]
  %v513 = vld [vmem:[%s494 + $0x90] sm:$0xff]
  %v514 = vld [vmem:[%s494 + $0x98] sm:$0xff]
  %v515 = vld [vmem:[%s494 + $0xa0] sm:$0xff]
  %v516 = vld [vmem:[%s494 + $0xa8] sm:$0xff]
  %v517 = vld [vmem:[%s494 + $0xb0] sm:$0xff]
  %v518 = vld [vmem:[%s494 + $0xb8] sm:$0xff]
  %v519 = vld [vmem:[%s494 + $0xc0] sm:$0xff]
  %v520 = vld [vmem:[%s494 + $0xc8] sm:$0xff]
  %v521 = vld [vmem:[%s494 + $0xd0] sm:$0xff]
  %v522 = vld [vmem:[%s494 + $0xd8] sm:$0xff]
  %v523 = vld [vmem:[%s494 + $0xe0] sm:$0xff]
  %v524 = vld [vmem:[%s494 + $0xe8] sm:$0xff]
  %v525 = vld [vmem:[%s494 + $0xf0] sm:$0xff]
  %v526 = vld [vmem:[%s494 + $0xf8] sm:$0xff]
  %v527 = vld [vmem:[%s494 + $0x100] sm:$0xff]
  %v528 = vld [vmem:[%s494 + $0x108] sm:$0xff]
  %v529 = vld [vmem:[%s494 + $0x110] sm:$0xff]
  %v530 = vld [vmem:[%s494 + $0x118] sm:$0xff]
  %v531 = vld [vmem:[%s494 + $0x120] sm:$0xff]
  %v532 = vld [vmem:[%s494 + $0x128] sm:$0xff]
  %v533 = vld [vmem:[%s494 + $0x130] sm:$0xff]
  %v534 = vld [vmem:[%s494 + $0x138] sm:$0xff]
  %v535 = vld [vmem:[%s494 + $0x140] sm:$0xff]
  %v536 = vld [vmem:[%s494 + $0x148] sm:$0xff]
  %v537 = vld [vmem:[%s494 + $0x150] sm:$0xff]
  %v538 = vld [vmem:[%s494 + $0x158] sm:$0xff]
  %v539 = vld [vmem:[%s494 + $0x160] sm:$0xff]
  %v540 = vld [vmem:[%s494 + $0x168] sm:$0xff]
  %v541 = vld [vmem:[%s494 + $0x170] sm:$0xff]
  %v542 = vld [vmem:[%s494 + $0x178] sm:$0xff]
  %v543 = vld [vmem:[%s494 + $0x180] sm:$0xff]
  %v544 = vld [vmem:[%s494 + $0x188] sm:$0xff]
  %v545 = vld [vmem:[%s494 + $0x190] sm:$0xff]
  %v546 = vld [vmem:[%s494 + $0x198] sm:$0xff]
  %v547 = vld [vmem:[%s494 + $0x1a0] sm:$0xff]
  %v548 = vld [vmem:[%s494 + $0x1a8] sm:$0xff]
  %v549 = vld [vmem:[%s494 + $0x1b0] sm:$0xff]
  %v550 = vld [vmem:[%s494 + $0x1b8] sm:$0xff]
  %v551 = vld [vmem:[%s494 + $0x1c0] sm:$0xff]
  %v552 = vld [vmem:[%s494 + $0x1c8] sm:$0xff]
  %v553 = vld [vmem:[%s494 + $0x1d0] sm:$0xff]
  %v554 = vld [vmem:[%s494 + $0x1d8] sm:$0xff]
  %v555 = vld [vmem:[%s494 + $0x1e0] sm:$0xff]
  %v556 = vld [vmem:[%s494 + $0x1e8] sm:$0xff]
  %v557 = vld [vmem:[%s494 + $0x1f0] sm:$0xff]
  %v558 = vld [vmem:[%s494 + $0x1f8] sm:$0xff]
  %559 = vmatprep.subr.mxu0 %v496
  %560 = vmatpush1.msra.mxu0 %v495
  %561 = vmatprep.subr.mxu0 %v498
  %562 = vmatpush1.msra.mxu0 %v497
  %563 = vmatprep.subr.mxu0 %v500
  %564 = vmatpush1.msra.mxu0 %v499
  %565 = vmatprep.subr.mxu0 %v502
  %566 = vmatpush1.msra.mxu0 %v501
  %567 = vmatprep.subr.mxu0 %v504
  %568 = vmatpush1.msra.mxu0 %v503
  %569 = vmatprep.subr.mxu0 %v506
  %570 = vmatpush1.msra.mxu0 %v505
  %571 = vmatprep.subr.mxu0 %v508
  %572 = vmatpush1.msra.mxu0 %v507
  %573 = vmatprep.subr.mxu0 %v510
  %574 = vmatpush1.msra.mxu0 %v509
  %575 = vmatprep.subr.mxu0 %v512
  %576 = vmatpush1.msra.mxu0 %v511
  %577 = vmatprep.subr.mxu0 %v514
  %578 = vmatpush1.msra.mxu0 %v513
  %579 = vmatprep.subr.mxu0 %v516
  %580 = vmatpush1.msra.mxu0 %v515
  %581 = vmatprep.subr.mxu0 %v518
  %582 = vmatpush1.msra.mxu0 %v517
  %583 = vmatprep.subr.mxu0 %v520
  %584 = vmatpush1.msra.mxu0 %v519
  %585 = vmatprep.subr.mxu0 %v522
  %586 = vmatpush1.msra.mxu0 %v521
  %587 = vmatprep.subr.mxu0 %v524
  %588 = vmatpush1.msra.mxu0 %v523
  %589 = vmatprep.subr.mxu0 %v526
  %590 = vmatpush1.msra.mxu0 %v525
  %591 = vmatprep.subr.mxu0 %v528
  %592 = vmatpush1.msra.mxu0 %v527
  %593 = vmatprep.subr.mxu0 %v530
  %594 = vmatpush1.msra.mxu0 %v529
  %595 = vmatprep.subr.mxu0 %v532
  %596 = vmatpush1.msra.mxu0 %v531
  %597 = vmatprep.subr.mxu0 %v534
  %598 = vmatpush1.msra.mxu0 %v533
  %599 = vmatprep.subr.mxu0 %v536
  %600 = vmatpush1.msra.mxu0 %v535
  %601 = vmatprep.subr.mxu0 %v538
  %602 = vmatpush1.msra.mxu0 %v537
  %603 = vmatprep.subr.mxu0 %v540
  %604 = vmatpush1.msra.mxu0 %v539
  %605 = vmatprep.subr.mxu0 %v542
  %606 = vmatpush1.msra.mxu0 %v541
  %607 = vmatprep.subr.mxu0 %v544
  %608 = vmatpush1.msra.mxu0 %v543
  %609 = vmatprep.subr.mxu0 %v546
  %610 = vmatpush1.msra.mxu0 %v545
  %611 = vmatprep.subr.mxu0 %v548
  %612 = vmatpush1.msra.mxu0 %v547
  %613 = vmatprep.subr.mxu0 %v550
  %614 = vmatpush1.msra.mxu0 %v549
  %615 = vmatprep.subr.mxu0 %v552
  %616 = vmatpush1.msra.mxu0 %v551
  %617 = vmatprep.subr.mxu0 %v554
  %618 = vmatpush1.msra.mxu0 %v553
  %619 = vmatprep.subr.mxu0 %v556
  %620 = vmatpush1.msra.mxu0 %v555
  %621 = vmatprep.subr.mxu0 %v558
  %622 = vmatpush1.msra.mxu0 %v557
  %623 = vmatprep.mubr.f32.mxu0 %v471
  %624 = vmatmul.mubr.f32.gmra.mrb[0].mxu0 %v468
  %v625 = vpop.f32.mrb[0].mxu0
  %v626 = vadd.f32 0.0, %v625
  %v627 = vpop.f32.mrb[0].mxu0
  %v628 = vadd.f32 0.0, %v627
  %629 = vmatprep.mubr.f32.mxu0 %v475
  %630 = vmatmul.mubr.f32.gmra.mrb[0].mxu0 %v473
  %v631 = vpop.f32.mrb[0].mxu0
  %v632 = vadd.f32 0.0, %v631
  %v633 = vpop.f32.mrb[0].mxu0
  %v634 = vadd.f32 0.0, %v633
  %635 = vmatprep.mubr.f32.mxu0 %v481
  %636 = vmatmul.mubr.f32.gmra.mrb[0].mxu0 %v478
  %v637 = vpop.f32.mrb[0].mxu0
  %v638 = vadd.f32 0.0, %v637
  %v639 = vpop.f32.mrb[0].mxu0
  %v640 = vadd.f32 0.0, %v639
  %641 = vmatprep.mubr.f32.mxu0 %v485
  %642 = vmatmul.mubr.f32.gmra.mrb[0].mxu0 %v483
  %v643 = vpop.f32.mrb[0].mxu0
  %v644 = vadd.f32 0.0, %v643
  %v645 = vpop.f32.mrb[0].mxu0
  %v646 = vadd.f32 0.0, %v645
  %647 = vdwg.mxu0
  %v648 = vadd.f32 %v427, %v626
  %v649 = vadd.f32 %v429, %v628
  %v650 = vadd.f32 %v433, %v632
  %v651 = vadd.f32 %v435, %v634
  %v652 = vadd.f32 %v439, %v638
  %v653 = vadd.f32 %v441, %v640
  %v654 = vadd.f32 %v445, %v644
  %v655 = vadd.f32 %v447, %v646
  %v656 = vadd.f32 %v648, %v650
  %v657 = vadd.f32 %v656, %v652
  %v658 = vadd.f32 %v657, %v654
  %v659 = vrot.slane %v658, 4
  %v660 = vadd.f32 %v658, %v659
  %v661 = vrot.slane %v660, 2
  %v662 = vadd.f32 %v660, %v661
  %v663 = vrot.slane %v662, 1
  %v664 = vadd.f32 %v662, %v663
  %v665 = vadd.f32 %v649, %v651
  %v666 = vadd.f32 %v665, %v653
  %v667 = vadd.f32 %v666, %v655
  %v668 = vrot.slane %v667, 4
  %v669 = vadd.f32 %v667, %v668
  %v670 = vrot.slane %v669, 2
  %v671 = vadd.f32 %v669, %v670
  %v672 = vrot.slane %v671, 1
  %v673 = vadd.f32 %v671, %v672
  %v674 = vmul.f32 %v648, %v648
  %v675 = vmul.f32 %v649, %v649
  %v676 = vmul.f32 %v650, %v650
  %v677 = vmul.f32 %v651, %v651
  %v678 = vmul.f32 %v652, %v652
  %v679 = vmul.f32 %v653, %v653
  %v680 = vmul.f32 %v654, %v654
  %v681 = vmul.f32 %v655, %v655
  %v682 = vadd.f32 %v674, %v676
  %v683 = vadd.f32 %v682, %v678
  %v684 = vadd.f32 %v683, %v680
  %v685 = vrot.slane %v684, 4
  %v686 = vadd.f32 %v684, %v685
  %v687 = vrot.slane %v686, 2
  %v688 = vadd.f32 %v686, %v687
  %v689 = vrot.slane %v688, 1
  %v690 = vadd.f32 %v688, %v689
  %v691 = vadd.f32 %v675, %v677
  %v692 = vadd.f32 %v691, %v679
  %v693 = vadd.f32 %v692, %v681
  %v694 = vrot.slane %v693, 4
  %v695 = vadd.f32 %v693, %v694
  %v696 = vrot.slane %v695, 2
  %v697 = vadd.f32 %v695, %v696
  %v698 = vrot.slane %v697, 1
  %v699 = vadd.f32 %v697, %v698
  %v700 = vld [vmem:[%s3] sm:$0xff]
  %v701 = vld [vmem:[%s3 + $0x8] sm:$0xff]
  %v702 = vld [vmem:[%s3 + $0x10] sm:$0xff]
  %v703 = vld [vmem:[%s3 + $0x18] sm:$0xff]
  %v704 = vld [vmem:[%s3 + $0x20] sm:$0xff]
  %v705 = vld [vmem:[%s3 + $0x28] sm:$0xff]
  %v706 = vld [vmem:[%s3 + $0x30] sm:$0xff]
  %v707 = vld [vmem:[%s3 + $0x38] sm:$0xff]
  %v708 = vld [vmem:[%s3 + $0x40] sm:$0xff]
  %v709 = vld [vmem:[%s3 + $0x48] sm:$0xff]
  %v710 = vld [vmem:[%s3 + $0x50] sm:$0xff]
  %v711 = vld [vmem:[%s3 + $0x58] sm:$0xff]
  %v712 = vld [vmem:[%s3 + $0x60] sm:$0xff]
  %v713 = vld [vmem:[%s3 + $0x68] sm:$0xff]
  %v714 = vld [vmem:[%s3 + $0x70] sm:$0xff]
  %v715 = vld [vmem:[%s3 + $0x78] sm:$0xff]
  %v716 = vld [vmem:[%s3 + $0x80] sm:$0xff]
  %v717 = vld [vmem:[%s3 + $0x88] sm:$0xff]
  %v718 = vld [vmem:[%s3 + $0x90] sm:$0xff]
  %v719 = vld [vmem:[%s3 + $0x98] sm:$0xff]
  %v720 = vld [vmem:[%s3 + $0xa0] sm:$0xff]
  %v721 = vld [vmem:[%s3 + $0xa8] sm:$0xff]
  %v722 = vld [vmem:[%s3 + $0xb0] sm:$0xff]
  %v723 = vld [vmem:[%s3 + $0xb8] sm:$0xff]
  %v724 = vld [vmem:[%s3 + $0xc0] sm:$0xff]
  %v725 = vld [vmem:[%s3 + $0xc8] sm:$0xff]
  %v726 = vld [vmem:[%s3 + $0xd0] sm:$0xff]
  %v727 = vld [vmem:[%s3 + $0xd8] sm:$0xff]
  %v728 = vld [vmem:[%s3 + $0xe0] sm:$0xff]
  %v729 = vld [vmem:[%s3 + $0xe8] sm:$0xff]
  %v730 = vld [vmem:[%s3 + $0xf0] sm:$0xff]
  %v731 = vld [vmem:[%s3 + $0xf8] sm:$0xff]
  %v732 = vld [vmem:[%s3 + $0x100] sm:$0xff]
  %v733 = vld [vmem:[%s3 + $0x108] sm:$0xff]
  %v734 = vld [vmem:[%s3 + $0x110] sm:$0xff]
  %v735 = vld [vmem:[%s3 + $0x118] sm:$0xff]
  %v736 = vld [vmem:[%s3 + $0x120] sm:$0xff]
  %v737 = vld [vmem:[%s3 + $0x128] sm:$0xff]
  %v738 = vld [vmem:[%s3 + $0x130] sm:$0xff]
  %v739 = vld [vmem:[%s3 + $0x138] sm:$0xff]
  %v740 = vld [vmem:[%s3 + $0x140] sm:$0xff]
  %v741 = vld [vmem:[%s3 + $0x148] sm:$0xff]
  %v742 = vld [vmem:[%s3 + $0x150] sm:$0xff]
  %v743 = vld [vmem:[%s3 + $0x158] sm:$0xff]
  %v744 = vld [vmem:[%s3 + $0x160] sm:$0xff]
  %v745 = vld [vmem:[%s3 + $0x168] sm:$0xff]
  %v746 = vld [vmem:[%s3 + $0x170] sm:$0xff]
  %v747 = vld [vmem:[%s3 + $0x178] sm:$0xff]
  %v748 = vld [vmem:[%s3 + $0x180] sm:$0xff]
  %v749 = vld [vmem:[%s3 + $0x188] sm:$0xff]
  %v750 = vld [vmem:[%s3 + $0x190] sm:$0xff]
  %v751 = vld [vmem:[%s3 + $0x198] sm:$0xff]
  %v752 = vld [vmem:[%s3 + $0x1a0] sm:$0xff]
  %v753 = vld [vmem:[%s3 + $0x1a8] sm:$0xff]
  %v754 = vld [vmem:[%s3 + $0x1b0] sm:$0xff]
  %v755 = vld [vmem:[%s3 + $0x1b8] sm:$0xff]
  %v756 = vld [vmem:[%s3 + $0x1c0] sm:$0xff]
  %v757 = vld [vmem:[%s3 + $0x1c8] sm:$0xff]
  %v758 = vld [vmem:[%s3 + $0x1d0] sm:$0xff]
  %v759 = vld [vmem:[%s3 + $0x1d8] sm:$0xff]
  %v760 = vld [vmem:[%s3 + $0x1e0] sm:$0xff]
  %v761 = vld [vmem:[%s3 + $0x1e8] sm:$0xff]
  %v762 = vld [vmem:[%s3 + $0x1f0] sm:$0xff]
  %v763 = vld [vmem:[%s3 + $0x1f8] sm:$0xff]
  %764 = vmatprep.subr.mxu0 %v701
  %765 = vmatpush1.msra.mxu0 %v700
  %766 = vmatprep.subr.mxu0 %v703
  %767 = vmatpush1.msra.mxu0 %v702
  %768 = vmatprep.subr.mxu0 %v705
  %769 = vmatpush1.msra.mxu0 %v704
  %770 = vmatprep.subr.mxu0 %v707
  %771 = vmatpush1.msra.mxu0 %v706
  %772 = vmatprep.subr.mxu0 %v709
  %773 = vmatpush1.msra.mxu0 %v708
  %774 = vmatprep.subr.mxu0 %v711
  %775 = vmatpush1.msra.mxu0 %v710
  %776 = vmatprep.subr.mxu0 %v713
  %777 = vmatpush1.msra.mxu0 %v712
  %778 = vmatprep.subr.mxu0 %v715
  %779 = vmatpush1.msra.mxu0 %v714
  %780 = vmatprep.subr.mxu0 %v717
  %781 = vmatpush1.msra.mxu0 %v716
  %782 = vmatprep.subr.mxu0 %v719
  %783 = vmatpush1.msra.mxu0 %v718
  %784 = vmatprep.subr.mxu0 %v721
  %785 = vmatpush1.msra.mxu0 %v720
  %786 = vmatprep.subr.mxu0 %v723
  %787 = vmatpush1.msra.mxu0 %v722
  %788 = vmatprep.subr.mxu0 %v725
  %789 = vmatpush1.msra.mxu0 %v724
  %790 = vmatprep.subr.mxu0 %v727
  %791 = vmatpush1.msra.mxu0 %v726
  %792 = vmatprep.subr.mxu0 %v729
  %793 = vmatpush1.msra.mxu0 %v728
  %794 = vmatprep.subr.mxu0 %v731
  %795 = vmatpush1.msra.mxu0 %v730
  %796 = vmatprep.subr.mxu0 %v733
  %797 = vmatpush1.msra.mxu0 %v732
  %798 = vmatprep.subr.mxu0 %v735
  %799 = vmatpush1.msra.mxu0 %v734
  %800 = vmatprep.subr.mxu0 %v737
  %801 = vmatpush1.msra.mxu0 %v736
  %802 = vmatprep.subr.mxu0 %v739
  %803 = vmatpush1.msra.mxu0 %v738
  %804 = vmatprep.subr.mxu0 %v741
  %805 = vmatpush1.msra.mxu0 %v740
  %806 = vmatprep.subr.mxu0 %v743
  %807 = vmatpush1.msra.mxu0 %v742
  %808 = vmatprep.subr.mxu0 %v745
  %809 = vmatpush1.msra.mxu0 %v744
  %810 = vmatprep.subr.mxu0 %v747
  %811 = vmatpush1.msra.mxu0 %v746
  %812 = vmatprep.subr.mxu0 %v749
  %813 = vmatpush1.msra.mxu0 %v748
  %814 = vmatprep.subr.mxu0 %v751
  %815 = vmatpush1.msra.mxu0 %v750
  %816 = vmatprep.subr.mxu0 %v753
  %817 = vmatpush1.msra.mxu0 %v752
  %818 = vmatprep.subr.mxu0 %v755
  %819 = vmatpush1.msra.mxu0 %v754
  %820 = vmatprep.subr.mxu0 %v757
  %821 = vmatpush1.msra.mxu0 %v756
  %822 = vmatprep.subr.mxu0 %v759
  %823 = vmatpush1.msra.mxu0 %v758
  %824 = vmatprep.subr.mxu0 %v761
  %825 = vmatpush1.msra.mxu0 %v760
  %826 = vmatprep.subr.mxu0 %v763
  %827 = vmatpush1.msra.mxu0 %v762
  %828 = vmatprep.mubr.f32.mxu0 %v673
  %829 = vmatmul.mubr.f32.gmra.mrb[0].mxu0 %v664
  %v830 = vpop.f32.mrb[0].mxu0
  %v831 = vadd.f32 0.0, %v830
  %v832 = vpop.f32.mrb[0].mxu0
  %v833 = vadd.f32 0.0, %v832
  %834 = vdwg.mxu0
  %835 = vmatprep.subr.mxu0 %v701
  %836 = vmatpush1.msra.mxu0 %v700
  %837 = vmatprep.subr.mxu0 %v703
  %838 = vmatpush1.msra.mxu0 %v702
  %839 = vmatprep.subr.mxu0 %v705
  %840 = vmatpush1.msra.mxu0 %v704
  %841 = vmatprep.subr.mxu0 %v707
  %842 = vmatpush1.msra.mxu0 %v706
  %843 = vmatprep.subr.mxu0 %v709
  %844 = vmatpush1.msra.mxu0 %v708
  %845 = vmatprep.subr.mxu0 %v711
  %846 = vmatpush1.msra.mxu0 %v710
  %847 = vmatprep.subr.mxu0 %v713
  %848 = vmatpush1.msra.mxu0 %v712
  %849 = vmatprep.subr.mxu0 %v715
  %850 = vmatpush1.msra.mxu0 %v714
  %851 = vmatprep.subr.mxu0 %v717
  %852 = vmatpush1.msra.mxu0 %v716
  %853 = vmatprep.subr.mxu0 %v719
  %854 = vmatpush1.msra.mxu0 %v718
  %855 = vmatprep.subr.mxu0 %v721
  %856 = vmatpush1.msra.mxu0 %v720
  %857 = vmatprep.subr.mxu0 %v723
  %858 = vmatpush1.msra.mxu0 %v722
  %859 = vmatprep.subr.mxu0 %v725
  %860 = vmatpush1.msra.mxu0 %v724
  %861 = vmatprep.subr.mxu0 %v727
  %862 = vmatpush1.msra.mxu0 %v726
  %863 = vmatprep.subr.mxu0 %v729
  %864 = vmatpush1.msra.mxu0 %v728
  %865 = vmatprep.subr.mxu0 %v731
  %866 = vmatpush1.msra.mxu0 %v730
  %867 = vmatprep.subr.mxu0 %v733
  %868 = vmatpush1.msra.mxu0 %v732
  %869 = vmatprep.subr.mxu0 %v735
  %870 = vmatpush1.msra.mxu0 %v734
  %871 = vmatprep.subr.mxu0 %v737
  %872 = vmatpush1.msra.mxu0 %v736
  %873 = vmatprep.subr.mxu0 %v739
  %874 = vmatpush1.msra.mxu0 %v738
  %875 = vmatprep.subr.mxu0 %v741
  %876 = vmatpush1.msra.mxu0 %v740
  %877 = vmatprep.subr.mxu0 %v743
  %878 = vmatpush1.msra.mxu0 %v742
  %879 = vmatprep.subr.mxu0 %v745
  %880 = vmatpush1.msra.mxu0 %v744
  %881 = vmatprep.subr.mxu0 %v747
  %882 = vmatpush1.msra.mxu0 %v746
  %883 = vmatprep.subr.mxu0 %v749
  %884 = vmatpush1.msra.mxu0 %v748
  %885 = vmatprep.subr.mxu0 %v751
  %886 = vmatpush1.msra.mxu0 %v750
  %887 = vmatprep.subr.mxu0 %v753
  %888 = vmatpush1.msra.mxu0 %v752
  %889 = vmatprep.subr.mxu0 %v755
  %890 = vmatpush1.msra.mxu0 %v754
  %891 = vmatprep.subr.mxu0 %v757
  %892 = vmatpush1.msra.mxu0 %v756
  %893 = vmatprep.subr.mxu0 %v759
  %894 = vmatpush1.msra.mxu0 %v758
  %895 = vmatprep.subr.mxu0 %v761
  %896 = vmatpush1.msra.mxu0 %v760
  %897 = vmatprep.subr.mxu0 %v763
  %898 = vmatpush1.msra.mxu0 %v762
  %899 = vmatprep.mubr.f32.mxu0 %v699
  %900 = vmatmul.mubr.f32.gmra.mrb[0].mxu0 %v690
  %v901 = vpop.f32.mrb[0].mxu0
  %v902 = vadd.f32 0.0, %v901
  %v903 = vpop.f32.mrb[0].mxu0
  %v904 = vadd.f32 0.0, %v903
  %905 = vdwg.mxu0
  %v906 = vmul.f32 %v831, 0.001953125
  %v907 = vmul.f32 %v833, 0.001953125
  %v908 = vmul.f32 %v902, 0.001953125
  %v909 = vmul.f32 %v904, 0.001953125
  %v910 = vmul.f32 %v906, %v906
  %v911 = vmul.f32 %v907, %v907
  %v912 = vsub.f32 %v908, %v910
  %v913 = vsub.f32 %v909, %v911
  %v914 = vld [vmem:[%s2] ss:$4 sm:$0x3]
  %s915 = scalar_lea.vmem %s2, 1
  %v916 = vld [vmem:[%s915] ss:$4 sm:$0x3]
  %v917 = vadd.f32 %v912, 1e-05
  %v918 = vadd.f32 %v913, 1e-05
  %v919 = vrsqrt.pop %v917
  %v920 = vrsqrt.pop %v918
  %v923 = vcombine.low %v919, %v920
  %v925 = vunpack.c.l.s4 1966171168
  %v926 = vunpack.c.0.s8 %v925
  %v927 = vlaneseq
  %v928 = vshrl.u32 %v927, 7
  %v929 = vsub.s32 %v926, %v928
  %v930 = vrot.slane %v923, %v929
  %v932 = vunpack.c.l.s4 1966171168
  %v933 = vunpack.c.0.s8 %v932
  %v934 = vlaneseq
  %v935 = vshrl.u32 %v934, 7
  %v936 = vsub.s32 %v933, %v935
  %v937 = vrot.slane %v930, %v936
  %v939 = vmul.f32 %v914, %v937
  %v941 = vlaneseq
  %v942 = vshrl.u32 %v941, 7
  %v943 = vsub.s32 0, %v942
  %v944 = vrot.slane %v939, %v943
  %v945 = vlaneseq
  %v946 = vshrl.u32 %v945, 7
  %v947 = vsub.s32 1, %v946
  %v948 = vrot.slane %v939, %v947
  %v951 = vmul.f32 %v906, %v944
  %v952 = vmul.f32 %v907, %v948
  %v955 = vcombine.low %v951, %v952
  %v957 = vunpack.c.l.s4 1966171168
  %v958 = vunpack.c.0.s8 %v957
  %v959 = vlaneseq
  %v960 = vshrl.u32 %v959, 7
  %v961 = vsub.s32 %v958, %v960
  %v962 = vrot.slane %v955, %v961
  %v964 = vunpack.c.l.s4 1966171168
  %v965 = vunpack.c.0.s8 %v964
  %v966 = vlaneseq
  %v967 = vshrl.u32 %v966, 7
  %v968 = vsub.s32 %v965, %v967
  %v969 = vrot.slane %v962, %v968
  %v971 = vsub.f32 %v916, %v969
  %v972 = vmul.f32 %v648, %v944
  %v973 = vmul.f32 %v649, %v948
  %v974 = vmul.f32 %v650, %v944
  %v975 = vmul.f32 %v651, %v948
  %v976 = vmul.f32 %v652, %v944
  %v977 = vmul.f32 %v653, %v948
  %v978 = vmul.f32 %v654, %v944
  %v979 = vmul.f32 %v655, %v948
  %v981 = vlaneseq
  %v982 = vshrl.u32 %v981, 7
  %v983 = vsub.s32 0, %v982
  %v984 = vrot.slane %v971, %v983
  %v985 = vlaneseq
  %v986 = vshrl.u32 %v985, 7
  %v987 = vsub.s32 1, %v986
  %v988 = vrot.slane %v971, %v987
  %v991 = vadd.f32 %v972, %v984
  %v992 = vadd.f32 %v973, %v988
  %v993 = vadd.f32 %v974, %v984
  %v994 = vadd.f32 %v975, %v988
  %v995 = vadd.f32 %v976, %v984
  %v996 = vadd.f32 %v977, %v988
  %v997 = vadd.f32 %v978, %v984
  %v998 = vadd.f32 %v979, %v988
  %v999 = vmax.f32 %v991, 0.0
  %v1000 = vmax.f32 %v992, 0.0
  %v1001 = vmax.f32 %v993, 0.0
  %v1002 = vmax.f32 %v994, 0.0
  %v1003 = vmax.f32 %v995, 0.0
  %v1004 = vmax.f32 %v996, 0.0
  %v1005 = vmax.f32 %v997, 0.0
  %v1006 = vmax.f32 %v998, 0.0
  %v1015 = vrot.slane %v999, 7
  %v1016 = vrot.slane %v1000, 7
  %v1017 = vrot.slane %v1001, 7
  %v1018 = vsel %vm48, %v1015, %v1017
  %v1019 = vrot.slane %v1002, 7
  %v1020 = vsel %vm48, %v1016, %v1019
  %v1021 = vrot.slane %v1003, 7
  %v1022 = vrot.slane %v1004, 7
  %v1023 = vrot.slane %v1005, 7
  %v1024 = vsel %vm48, %v1021, %v1023
  %v1025 = vrot.slane %v1006, 7
  %v1026 = vsel %vm48, %v1022, %v1025
  %1039 = vst [vmem:[#allocation2] sm:$0xfe] %v1015
  %1040 = vst [vmem:[#allocation2 + $0x8] sm:$0xfe] %v1016
  %1041 = vst [vmem:[#allocation2 + $0x10] sm:$0xff] %v1018
  %1042 = vst [vmem:[#allocation2 + $0x18] sm:$0xff] %v1020
  %1043 = vst [vmem:[#allocation2 + $0x20] sm:$0x1] %v1017
  %1044 = vst [vmem:[#allocation2 + $0x28] sm:$0x1] %v1019
  %1045 = vst [vmem:[#allocation2 + $0x30] sm:$0xfe] %v1021
  %1046 = vst [vmem:[#allocation2 + $0x38] sm:$0xfe] %v1022
  %1047 = vst [vmem:[#allocation2 + $0x40] sm:$0xff] %v1024
  %1048 = vst [vmem:[#allocation2 + $0x48] sm:$0xff] %v1026
  %1049 = vst [vmem:[#allocation2 + $0x50] sm:$0x1] %v1023
  %1050 = vst [vmem:[#allocation2 + $0x58] sm:$0x1] %v1025
  %v1051 = vld [vmem:[#allocation2] sm:$0xff]
  %v1052 = vld [vmem:[#allocation2 + $0x8] sm:$0xff]
  %v1053 = vld [vmem:[#allocation2 + $0x10] sm:$0xff]
  %v1054 = vld [vmem:[#allocation2 + $0x18] sm:$0xff]
  %v1055 = vld [vmem:[#allocation2 + $0x30] sm:$0xff]
  %v1056 = vld [vmem:[#allocation2 + $0x38] sm:$0xff]
  %v1057 = vld [vmem:[#allocation2 + $0x40] sm:$0xff]
  %v1058 = vld [vmem:[#allocation2 + $0x48] sm:$0xff]
  %s1059 = scalar_lea.vmem %s1, 1536
  %v1060 = vld [vmem:[%s1059] sm:$0xff]
  %v1061 = vld [vmem:[%s1059 + $0x8] sm:$0xff]
  %v1062 = vld [vmem:[%s1059 + $0x10] sm:$0xff]
  %v1063 = vld [vmem:[%s1059 + $0x18] sm:$0xff]
  %v1064 = vld [vmem:[%s1059 + $0x20] sm:$0xff]
  %v1065 = vld [vmem:[%s1059 + $0x28] sm:$0xff]
  %v1066 = vld [vmem:[%s1059 + $0x30] sm:$0xff]
  %v1067 = vld [vmem:[%s1059 + $0x38] sm:$0xff]
  %v1068 = vld [vmem:[%s1059 + $0x40] sm:$0xff]
  %v1069 = vld [vmem:[%s1059 + $0x48] sm:$0xff]
  %v1070 = vld [vmem:[%s1059 + $0x50] sm:$0xff]
  %v1071 = vld [vmem:[%s1059 + $0x58] sm:$0xff]
  %v1072 = vld [vmem:[%s1059 + $0x60] sm:$0xff]
  %v1073 = vld [vmem:[%s1059 + $0x68] sm:$0xff]
  %v1074 = vld [vmem:[%s1059 + $0x70] sm:$0xff]
  %v1075 = vld [vmem:[%s1059 + $0x78] sm:$0xff]
  %v1076 = vld [vmem:[%s1059 + $0x80] sm:$0xff]
  %v1077 = vld [vmem:[%s1059 + $0x88] sm:$0xff]
  %v1078 = vld [vmem:[%s1059 + $0x90] sm:$0xff]
  %v1079 = vld [vmem:[%s1059 + $0x98] sm:$0xff]
  %v1080 = vld [vmem:[%s1059 + $0xa0] sm:$0xff]
  %v1081 = vld [vmem:[%s1059 + $0xa8] sm:$0xff]
  %v1082 = vld [vmem:[%s1059 + $0xb0] sm:$0xff]
  %v1083 = vld [vmem:[%s1059 + $0xb8] sm:$0xff]
  %v1084 = vld [vmem:[%s1059 + $0xc0] sm:$0xff]
  %v1085 = vld [vmem:[%s1059 + $0xc8] sm:$0xff]
  %v1086 = vld [vmem:[%s1059 + $0xd0] sm:$0xff]
  %v1087 = vld [vmem:[%s1059 + $0xd8] sm:$0xff]
  %v1088 = vld [vmem:[%s1059 + $0xe0] sm:$0xff]
  %v1089 = vld [vmem:[%s1059 + $0xe8] sm:$0xff]
  %v1090 = vld [vmem:[%s1059 + $0xf0] sm:$0xff]
  %v1091 = vld [vmem:[%s1059 + $0xf8] sm:$0xff]
  %v1092 = vld [vmem:[%s1059 + $0x100] sm:$0xff]
  %v1093 = vld [vmem:[%s1059 + $0x108] sm:$0xff]
  %v1094 = vld [vmem:[%s1059 + $0x110] sm:$0xff]
  %v1095 = vld [vmem:[%s1059 + $0x118] sm:$0xff]
  %v1096 = vld [vmem:[%s1059 + $0x120] sm:$0xff]
  %v1097 = vld [vmem:[%s1059 + $0x128] sm:$0xff]
  %v1098 = vld [vmem:[%s1059 + $0x130] sm:$0xff]
  %v1099 = vld [vmem:[%s1059 + $0x138] sm:$0xff]
  %v1100 = vld [vmem:[%s1059 + $0x140] sm:$0xff]
  %v1101 = vld [vmem:[%s1059 + $0x148] sm:$0xff]
  %v1102 = vld [vmem:[%s1059 + $0x150] sm:$0xff]
  %v1103 = vld [vmem:[%s1059 + $0x158] sm:$0xff]
  %v1104 = vld [vmem:[%s1059 + $0x160] sm:$0xff]
  %v1105 = vld [vmem:[%s1059 + $0x168] sm:$0xff]
  %v1106 = vld [vmem:[%s1059 + $0x170] sm:$0xff]
  %v1107 = vld [vmem:[%s1059 + $0x178] sm:$0xff]
  %v1108 = vld [vmem:[%s1059 + $0x180] sm:$0xff]
  %v1109 = vld [vmem:[%s1059 + $0x188] sm:$0xff]
  %v1110 = vld [vmem:[%s1059 + $0x190] sm:$0xff]
  %v1111 = vld [vmem:[%s1059 + $0x198] sm:$0xff]
  %v1112 = vld [vmem:[%s1059 + $0x1a0] sm:$0xff]
  %v1113 = vld [vmem:[%s1059 + $0x1a8] sm:$0xff]
  %v1114 = vld [vmem:[%s1059 + $0x1b0] sm:$0xff]
  %v1115 = vld [vmem:[%s1059 + $0x1b8] sm:$0xff]
  %v1116 = vld [vmem:[%s1059 + $0x1c0] sm:$0xff]
  %v1117 = vld [vmem:[%s1059 + $0x1c8] sm:$0xff]
  %v1118 = vld [vmem:[%s1059 + $0x1d0] sm:$0xff]
  %v1119 = vld [vmem:[%s1059 + $0x1d8] sm:$0xff]
  %v1120 = vld [vmem:[%s1059 + $0x1e0] sm:$0xff]
  %v1121 = vld [vmem:[%s1059 + $0x1e8] sm:$0xff]
  %v1122 = vld [vmem:[%s1059 + $0x1f0] sm:$0xff]
  %v1123 = vld [vmem:[%s1059 + $0x1f8] sm:$0xff]
  %v1124 = vld [vmem:[#allocation2] sm:$0xfe]
  %v1125 = vld [vmem:[#allocation2 + $0x8] sm:$0xfe]
  %v1126 = vld [vmem:[#allocation2 + $0x20] sm:$0x1]
  %v1127 = vld [vmem:[#allocation2 + $0x28] sm:$0x1]
  %v1128 = vld [vmem:[#allocation2 + $0x30] sm:$0xfe]
  %v1129 = vld [vmem:[#allocation2 + $0x38] sm:$0xfe]
  %v1130 = vld [vmem:[#allocation2 + $0x50] sm:$0x1]
  %v1131 = vld [vmem:[#allocation2 + $0x58] sm:$0x1]
  %v1144 = vrot.slane %v1124, 1
  %v1145 = vrot.slane %v1053, 1
  %v1146 = vsel %vm177, %v1144, %v1145
  %v1147 = vrot.slane %v1125, 1
  %v1148 = vrot.slane %v1054, 1
  %v1149 = vsel %vm177, %v1147, %v1148
  %v1150 = vrot.slane %v1126, 1
  %v1151 = vsel %vm177, %v1145, %v1150
  %v1152 = vrot.slane %v1127, 1
  %v1153 = vsel %vm177, %v1148, %v1152
  %v1154 = vrot.slane %v1128, 1
  %v1155 = vrot.slane %v1057, 1
  %v1156 = vsel %vm177, %v1154, %v1155
  %v1157 = vrot.slane %v1129, 1
  %v1158 = vrot.slane %v1058, 1
  %v1159 = vsel %vm177, %v1157, %v1158
  %v1160 = vrot.slane %v1130, 1
  %v1161 = vsel %vm177, %v1155, %v1160
  %v1162 = vrot.slane %v1131, 1
  %v1163 = vsel %vm177, %v1158, %v1162
  %s1172 = scalar_lea.vmem %s1, 2048
  %v1173 = vld [vmem:[%s1172] sm:$0xff]
  %v1174 = vld [vmem:[%s1172 + $0x8] sm:$0xff]
  %v1175 = vld [vmem:[%s1172 + $0x10] sm:$0xff]
  %v1176 = vld [vmem:[%s1172 + $0x18] sm:$0xff]
  %v1177 = vld [vmem:[%s1172 + $0x20] sm:$0xff]
  %v1178 = vld [vmem:[%s1172 + $0x28] sm:$0xff]
  %v1179 = vld [vmem:[%s1172 + $0x30] sm:$0xff]
  %v1180 = vld [vmem:[%s1172 + $0x38] sm:$0xff]
  %v1181 = vld [vmem:[%s1172 + $0x40] sm:$0xff]
  %v1182 = vld [vmem:[%s1172 + $0x48] sm:$0xff]
  %v1183 = vld [vmem:[%s1172 + $0x50] sm:$0xff]
  %v1184 = vld [vmem:[%s1172 + $0x58] sm:$0xff]
  %v1185 = vld [vmem:[%s1172 + $0x60] sm:$0xff]
  %v1186 = vld [vmem:[%s1172 + $0x68] sm:$0xff]
  %v1187 = vld [vmem:[%s1172 + $0x70] sm:$0xff]
  %v1188 = vld [vmem:[%s1172 + $0x78] sm:$0xff]
  %v1189 = vld [vmem:[%s1172 + $0x80] sm:$0xff]
  %v1190 = vld [vmem:[%s1172 + $0x88] sm:$0xff]
  %v1191 = vld [vmem:[%s1172 + $0x90] sm:$0xff]
  %v1192 = vld [vmem:[%s1172 + $0x98] sm:$0xff]
  %v1193 = vld [vmem:[%s1172 + $0xa0] sm:$0xff]
  %v1194 = vld [vmem:[%s1172 + $0xa8] sm:$0xff]
  %v1195 = vld [vmem:[%s1172 + $0xb0] sm:$0xff]
  %v1196 = vld [vmem:[%s1172 + $0xb8] sm:$0xff]
  %v1197 = vld [vmem:[%s1172 + $0xc0] sm:$0xff]
  %v1198 = vld [vmem:[%s1172 + $0xc8] sm:$0xff]
  %v1199 = vld [vmem:[%s1172 + $0xd0] sm:$0xff]
  %v1200 = vld [vmem:[%s1172 + $0xd8] sm:$0xff]
  %v1201 = vld [vmem:[%s1172 + $0xe0] sm:$0xff]
  %v1202 = vld [vmem:[%s1172 + $0xe8] sm:$0xff]
  %v1203 = vld [vmem:[%s1172 + $0xf0] sm:$0xff]
  %v1204 = vld [vmem:[%s1172 + $0xf8] sm:$0xff]
  %v1205 = vld [vmem:[%s1172 + $0x100] sm:$0xff]
  %v1206 = vld [vmem:[%s1172 + $0x108] sm:$0xff]
  %v1207 = vld [vmem:[%s1172 + $0x110] sm:$0xff]
  %v1208 = vld [vmem:[%s1172 + $0x118] sm:$0xff]
  %v1209 = vld [vmem:[%s1172 + $0x120] sm:$0xff]
  %v1210 = vld [vmem:[%s1172 + $0x128] sm:$0xff]
  %v1211 = vld [vmem:[%s1172 + $0x130] sm:$0xff]
  %v1212 = vld [vmem:[%s1172 + $0x138] sm:$0xff]
  %v1213 = vld [vmem:[%s1172 + $0x140] sm:$0xff]
  %v1214 = vld [vmem:[%s1172 + $0x148] sm:$0xff]
  %v1215 = vld [vmem:[%s1172 + $0x150] sm:$0xff]
  %v1216 = vld [vmem:[%s1172 + $0x158] sm:$0xff]
  %v1217 = vld [vmem:[%s1172 + $0x160] sm:$0xff]
  %v1218 = vld [vmem:[%s1172 + $0x168] sm:$0xff]
  %v1219 = vld [vmem:[%s1172 + $0x170] sm:$0xff]
  %v1220 = vld [vmem:[%s1172 + $0x178] sm:$0xff]
  %v1221 = vld [vmem:[%s1172 + $0x180] sm:$0xff]
  %v1222 = vld [vmem:[%s1172 + $0x188] sm:$0xff]
  %v1223 = vld [vmem:[%s1172 + $0x190] sm:$0xff]
  %v1224 = vld [vmem:[%s1172 + $0x198] sm:$0xff]
  %v1225 = vld [vmem:[%s1172 + $0x1a0] sm:$0xff]
  %v1226 = vld [vmem:[%s1172 + $0x1a8] sm:$0xff]
  %v1227 = vld [vmem:[%s1172 + $0x1b0] sm:$0xff]
  %v1228 = vld [vmem:[%s1172 + $0x1b8] sm:$0xff]
  %v1229 = vld [vmem:[%s1172 + $0x1c0] sm:$0xff]
  %v1230 = vld [vmem:[%s1172 + $0x1c8] sm:$0xff]
  %v1231 = vld [vmem:[%s1172 + $0x1d0] sm:$0xff]
  %v1232 = vld [vmem:[%s1172 + $0x1d8] sm:$0xff]
  %v1233 = vld [vmem:[%s1172 + $0x1e0] sm:$0xff]
  %v1234 = vld [vmem:[%s1172 + $0x1e8] sm:$0xff]
  %v1235 = vld [vmem:[%s1172 + $0x1f0] sm:$0xff]
  %v1236 = vld [vmem:[%s1172 + $0x1f8] sm:$0xff]
  %1237 = vmatprep.subr.mxu0 %v1174
  %1238 = vmatpush1.msra.mxu0 %v1173
  %1239 = vmatprep.subr.mxu0 %v1176
  %1240 = vmatpush1.msra.mxu0 %v1175
  %1241 = vmatprep.subr.mxu0 %v1178
  %1242 = vmatpush1.msra.mxu0 %v1177
  %1243 = vmatprep.subr.mxu0 %v1180
  %1244 = vmatpush1.msra.mxu0 %v1179
  %1245 = vmatprep.subr.mxu0 %v1182
  %1246 = vmatpush1.msra.mxu0 %v1181
  %1247 = vmatprep.subr.mxu0 %v1184
  %1248 = vmatpush1.msra.mxu0 %v1183
  %1249 = vmatprep.subr.mxu0 %v1186
  %1250 = vmatpush1.msra.mxu0 %v1185
  %1251 = vmatprep.subr.mxu0 %v1188
  %1252 = vmatpush1.msra.mxu0 %v1187
  %1253 = vmatprep.subr.mxu0 %v1190
  %1254 = vmatpush1.msra.mxu0 %v1189
  %1255 = vmatprep.subr.mxu0 %v1192
  %1256 = vmatpush1.msra.mxu0 %v1191
  %1257 = vmatprep.subr.mxu0 %v1194
  %1258 = vmatpush1.msra.mxu0 %v1193
  %1259 = vmatprep.subr.mxu0 %v1196
  %1260 = vmatpush1.msra.mxu0 %v1195
  %1261 = vmatprep.subr.mxu0 %v1198
  %1262 = vmatpush1.msra.mxu0 %v1197
  %1263 = vmatprep.subr.mxu0 %v1200
  %1264 = vmatpush1.msra.mxu0 %v1199
  %1265 = vmatprep.subr.mxu0 %v1202
  %1266 = vmatpush1.msra.mxu0 %v1201
  %1267 = vmatprep.subr.mxu0 %v1204
  %1268 = vmatpush1.msra.mxu0 %v1203
  %1269 = vmatprep.subr.mxu0 %v1206
  %1270 = vmatpush1.msra.mxu0 %v1205
  %1271 = vmatprep.subr.mxu0 %v1208
  %1272 = vmatpush1.msra.mxu0 %v1207
  %1273 = vmatprep.subr.mxu0 %v1210
  %1274 = vmatpush1.msra.mxu0 %v1209
  %1275 = vmatprep.subr.mxu0 %v1212
  %1276 = vmatpush1.msra.mxu0 %v1211
  %1277 = vmatprep.subr.mxu0 %v1214
  %1278 = vmatpush1.msra.mxu0 %v1213
  %1279 = vmatprep.subr.mxu0 %v1216
  %1280 = vmatpush1.msra.mxu0 %v1215
  %1281 = vmatprep.subr.mxu0 %v1218
  %1282 = vmatpush1.msra.mxu0 %v1217
  %1283 = vmatprep.subr.mxu0 %v1220
  %1284 = vmatpush1.msra.mxu0 %v1219
  %1285 = vmatprep.subr.mxu0 %v1222
  %1286 = vmatpush1.msra.mxu0 %v1221
  %1287 = vmatprep.subr.mxu0 %v1224
  %1288 = vmatpush1.msra.mxu0 %v1223
  %1289 = vmatprep.subr.mxu0 %v1226
  %1290 = vmatpush1.msra.mxu0 %v1225
  %1291 = vmatprep.subr.mxu0 %v1228
  %1292 = vmatpush1.msra.mxu0 %v1227
  %1293 = vmatprep.subr.mxu0 %v1230
  %1294 = vmatpush1.msra.mxu0 %v1229
  %1295 = vmatprep.subr.mxu0 %v1232
  %1296 = vmatpush1.msra.mxu0 %v1231
  %1297 = vmatprep.subr.mxu0 %v1234
  %1298 = vmatpush1.msra.mxu0 %v1233
  %1299 = vmatprep.subr.mxu0 %v1236
  %1300 = vmatpush1.msra.mxu0 %v1235
  %1301 = vmatprep.mubr.f32.mxu0 %v1149
  %1302 = vmatmul.mubr.f32.gmra.mrb[0].mxu0 %v1146
  %v1303 = vpop.f32.mrb[0].mxu0
  %v1304 = vadd.f32 0.0, %v1303
  %v1305 = vpop.f32.mrb[0].mxu0
  %v1306 = vadd.f32 0.0, %v1305
  %1307 = vmatprep.mubr.f32.mxu0 %v1153
  %1308 = vmatmul.mubr.f32.gmra.mrb[0].mxu0 %v1151
  %v1309 = vpop.f32.mrb[0].mxu0
  %v1310 = vadd.f32 0.0, %v1309
  %v1311 = vpop.f32.mrb[0].mxu0
  %v1312 = vadd.f32 0.0, %v1311
  %1313 = vmatprep.mubr.f32.mxu0 %v1159
  %1314 = vmatmul.mubr.f32.gmra.mrb[0].mxu0 %v1156
  %v1315 = vpop.f32.mrb[0].mxu0
  %v1316 = vadd.f32 0.0, %v1315
  %v1317 = vpop.f32.mrb[0].mxu0
  %v1318 = vadd.f32 0.0, %v1317
  %1319 = vmatprep.mubr.f32.mxu0 %v1163
  %1320 = vmatmul.mubr.f32.gmra.mrb[0].mxu0 %v1161
  %v1321 = vpop.f32.mrb[0].mxu0
  %v1322 = vadd.f32 0.0, %v1321
  %v1323 = vpop.f32.mrb[0].mxu0
  %v1324 = vadd.f32 0.0, %v1323
  %1325 = vdwg.mxu0
  %1326 = vmatprep.subr.mxu0 %v1061
  %1327 = vmatpush1.msra.mxu0 %v1060
  %1328 = vmatprep.subr.mxu0 %v1063
  %1329 = vmatpush1.msra.mxu0 %v1062
  %1330 = vmatprep.subr.mxu0 %v1065
  %1331 = vmatpush1.msra.mxu0 %v1064
  %1332 = vmatprep.subr.mxu0 %v1067
  %1333 = vmatpush1.msra.mxu0 %v1066
  %1334 = vmatprep.subr.mxu0 %v1069
  %1335 = vmatpush1.msra.mxu0 %v1068
  %1336 = vmatprep.subr.mxu0 %v1071
  %1337 = vmatpush1.msra.mxu0 %v1070
  %1338 = vmatprep.subr.mxu0 %v1073
  %1339 = vmatpush1.msra.mxu0 %v1072
  %1340 = vmatprep.subr.mxu0 %v1075
  %1341 = vmatpush1.msra.mxu0 %v1074
  %1342 = vmatprep.subr.mxu0 %v1077
  %1343 = vmatpush1.msra.mxu0 %v1076
  %1344 = vmatprep.subr.mxu0 %v1079
  %1345 = vmatpush1.msra.mxu0 %v1078
  %1346 = vmatprep.subr.mxu0 %v1081
  %1347 = vmatpush1.msra.mxu0 %v1080
  %1348 = vmatprep.subr.mxu0 %v1083
  %1349 = vmatpush1.msra.mxu0 %v1082
  %1350 = vmatprep.subr.mxu0 %v1085
  %1351 = vmatpush1.msra.mxu0 %v1084
  %1352 = vmatprep.subr.mxu0 %v1087
  %1353 = vmatpush1.msra.mxu0 %v1086
  %1354 = vmatprep.subr.mxu0 %v1089
  %1355 = vmatpush1.msra.mxu0 %v1088
  %1356 = vmatprep.subr.mxu0 %v1091
  %1357 = vmatpush1.msra.mxu0 %v1090
  %1358 = vmatprep.subr.mxu0 %v1093
  %1359 = vmatpush1.msra.mxu0 %v1092
  %1360 = vmatprep.subr.mxu0 %v1095
  %1361 = vmatpush1.msra.mxu0 %v1094
  %1362 = vmatprep.subr.mxu0 %v1097
  %1363 = vmatpush1.msra.mxu0 %v1096
  %1364 = vmatprep.subr.mxu0 %v1099
  %1365 = vmatpush1.msra.mxu0 %v1098
  %1366 = vmatprep.subr.mxu0 %v1101
  %1367 = vmatpush1.msra.mxu0 %v1100
  %1368 = vmatprep.subr.mxu0 %v1103
  %1369 = vmatpush1.msra.mxu0 %v1102
  %1370 = vmatprep.subr.mxu0 %v1105
  %1371 = vmatpush1.msra.mxu0 %v1104
  %1372 = vmatprep.subr.mxu0 %v1107
  %1373 = vmatpush1.msra.mxu0 %v1106
  %1374 = vmatprep.subr.mxu0 %v1109
  %1375 = vmatpush1.msra.mxu0 %v1108
  %1376 = vmatprep.subr.mxu0 %v1111
  %1377 = vmatpush1.msra.mxu0 %v1110
  %1378 = vmatprep.subr.mxu0 %v1113
  %1379 = vmatpush1.msra.mxu0 %v1112
  %1380 = vmatprep.subr.mxu0 %v1115
  %1381 = vmatpush1.msra.mxu0 %v1114
  %1382 = vmatprep.subr.mxu0 %v1117
  %1383 = vmatpush1.msra.mxu0 %v1116
  %1384 = vmatprep.subr.mxu0 %v1119
  %1385 = vmatpush1.msra.mxu0 %v1118
  %1386 = vmatprep.subr.mxu0 %v1121
  %1387 = vmatpush1.msra.mxu0 %v1120
  %1388 = vmatprep.subr.mxu0 %v1123
  %1389 = vmatpush1.msra.mxu0 %v1122
  %1390 = vmatprep.mubr.f32.mxu0 %v1052
  %1391 = vmatmul.mubr.f32.gmra.mrb[0].mxu0 %v1051
  %v1392 = vpop.f32.mrb[0].mxu0
  %v1393 = vadd.f32 %v1304, %v1392
  %v1394 = vpop.f32.mrb[0].mxu0
  %v1395 = vadd.f32 %v1306, %v1394
  %1396 = vmatprep.mubr.f32.mxu0 %v1054
  %1397 = vmatmul.mubr.f32.gmra.mrb[0].mxu0 %v1053
  %v1398 = vpop.f32.mrb[0].mxu0
  %v1399 = vadd.f32 %v1310, %v1398
  %v1400 = vpop.f32.mrb[0].mxu0
  %v1401 = vadd.f32 %v1312, %v1400
  %1402 = vmatprep.mubr.f32.mxu0 %v1056
  %1403 = vmatmul.mubr.f32.gmra.mrb[0].mxu0 %v1055
  %v1404 = vpop.f32.mrb[0].mxu0
  %v1405 = vadd.f32 %v1316, %v1404
  %v1406 = vpop.f32.mrb[0].mxu0
  %v1407 = vadd.f32 %v1318, %v1406
  %1408 = vmatprep.mubr.f32.mxu0 %v1058
  %1409 = vmatmul.mubr.f32.gmra.mrb[0].mxu0 %v1057
  %v1410 = vpop.f32.mrb[0].mxu0
  %v1411 = vadd.f32 %v1322, %v1410
  %v1412 = vpop.f32.mrb[0].mxu0
  %v1413 = vadd.f32 %v1324, %v1412
  %1414 = vdwg.mxu0
  %v1415 = vld [vmem:[#allocation2] sm:$0xfc]
  %v1416 = vld [vmem:[#allocation2 + $0x8] sm:$0xfc]
  %v1417 = vld [vmem:[#allocation2 + $0x20] sm:$0x3]
  %v1418 = vld [vmem:[#allocation2 + $0x28] sm:$0x3]
  %v1419 = vld [vmem:[#allocation2 + $0x30] sm:$0xfc]
  %v1420 = vld [vmem:[#allocation2 + $0x38] sm:$0xfc]
  %v1421 = vld [vmem:[#allocation2 + $0x50] sm:$0x3]
  %v1422 = vld [vmem:[#allocation2 + $0x58] sm:$0x3]
  %v1431 = vrot.slane %v1415, 2
  %v1432 = vrot.slane %v1053, 2
  %v1433 = vsel %vm465, %v1431, %v1432
  %v1434 = vrot.slane %v1416, 2
  %v1435 = vrot.slane %v1054, 2
  %v1436 = vsel %vm465, %v1434, %v1435
  %v1437 = vrot.slane %v1417, 2
  %v1438 = vsel %vm465, %v1432, %v1437
  %v1439 = vrot.slane %v1418, 2
  %v1440 = vsel %vm465, %v1435, %v1439
  %v1441 = vrot.slane %v1419, 2
  %v1442 = vrot.slane %v1057, 2
  %v1443 = vsel %vm465, %v1441, %v1442
  %v1444 = vrot.slane %v1420, 2
  %v1445 = vrot.slane %v1058, 2
  %v1446 = vsel %vm465, %v1444, %v1445
  %v1447 = vrot.slane %v1421, 2
  %v1448 = vsel %vm465, %v1442, %v1447
  %v1449 = vrot.slane %v1422, 2
  %v1450 = vsel %vm465, %v1445, %v1449
  %s1459 = scalar_lea.vmem %s1, 2560
  %v1460 = vld [vmem:[%s1459] sm:$0xff]
  %v1461 = vld [vmem:[%s1459 + $0x8] sm:$0xff]
  %v1462 = vld [vmem:[%s1459 + $0x10] sm:$0xff]
  %v1463 = vld [vmem:[%s1459 + $0x18] sm:$0xff]
  %v1464 = vld [vmem:[%s1459 + $0x20] sm:$0xff]
  %v1465 = vld [vmem:[%s1459 + $0x28] sm:$0xff]
  %v1466 = vld [vmem:[%s1459 + $0x30] sm:$0xff]
  %v1467 = vld [vmem:[%s1459 + $0x38] sm:$0xff]
  %v1468 = vld [vmem:[%s1459 + $0x40] sm:$0xff]
  %v1469 = vld [vmem:[%s1459 + $0x48] sm:$0xff]
  %v1470 = vld [vmem:[%s1459 + $0x50] sm:$0xff]
  %v1471 = vld [vmem:[%s1459 + $0x58] sm:$0xff]
  %v1472 = vld [vmem:[%s1459 + $0x60] sm:$0xff]
  %v1473 = vld [vmem:[%s1459 + $0x68] sm:$0xff]
  %v1474 = vld [vmem:[%s1459 + $0x70] sm:$0xff]
  %v1475 = vld [vmem:[%s1459 + $0x78] sm:$0xff]
  %v1476 = vld [vmem:[%s1459 + $0x80] sm:$0xff]
  %v1477 = vld [vmem:[%s1459 + $0x88] sm:$0xff]
  %v1478 = vld [vmem:[%s1459 + $0x90] sm:$0xff]
  %v1479 = vld [vmem:[%s1459 + $0x98] sm:$0xff]
  %v1480 = vld [vmem:[%s1459 + $0xa0] sm:$0xff]
  %v1481 = vld [vmem:[%s1459 + $0xa8] sm:$0xff]
  %v1482 = vld [vmem:[%s1459 + $0xb0] sm:$0xff]
  %v1483 = vld [vmem:[%s1459 + $0xb8] sm:$0xff]
  %v1484 = vld [vmem:[%s1459 + $0xc0] sm:$0xff]
  %v1485 = vld [vmem:[%s1459 + $0xc8] sm:$0xff]
  %v1486 = vld [vmem:[%s1459 + $0xd0] sm:$0xff]
  %v1487 = vld [vmem:[%s1459 + $0xd8] sm:$0xff]
  %v1488 = vld [vmem:[%s1459 + $0xe0] sm:$0xff]
  %v1489 = vld [vmem:[%s1459 + $0xe8] sm:$0xff]
  %v1490 = vld [vmem:[%s1459 + $0xf0] sm:$0xff]
  %v1491 = vld [vmem:[%s1459 + $0xf8] sm:$0xff]
  %v1492 = vld [vmem:[%s1459 + $0x100] sm:$0xff]
  %v1493 = vld [vmem:[%s1459 + $0x108] sm:$0xff]
  %v1494 = vld [vmem:[%s1459 + $0x110] sm:$0xff]
  %v1495 = vld [vmem:[%s1459 + $0x118] sm:$0xff]
  %v1496 = vld [vmem:[%s1459 + $0x120] sm:$0xff]
  %v1497 = vld [vmem:[%s1459 + $0x128] sm:$0xff]
  %v1498 = vld [vmem:[%s1459 + $0x130] sm:$0xff]
  %v1499 = vld [vmem:[%s1459 + $0x138] sm:$0xff]
  %v1500 = vld [vmem:[%s1459 + $0x140] sm:$0xff]
  %v1501 = vld [vmem:[%s1459 + $0x148] sm:$0xff]
  %v1502 = vld [vmem:[%s1459 + $0x150] sm:$0xff]
  %v1503 = vld [vmem:[%s1459 + $0x158] sm:$0xff]
  %v1504 = vld [vmem:[%s1459 + $0x160] sm:$0xff]
  %v1505 = vld [vmem:[%s1459 + $0x168] sm:$0xff]
  %v1506 = vld [vmem:[%s1459 + $0x170] sm:$0xff]
  %v1507 = vld [vmem:[%s1459 + $0x178] sm:$0xff]
  %v1508 = vld [vmem:[%s1459 + $0x180] sm:$0xff]
  %v1509 = vld [vmem:[%s1459 + $0x188] sm:$0xff]
  %v1510 = vld [vmem:[%s1459 + $0x190] sm:$0xff]
  %v1511 = vld [vmem:[%s1459 + $0x198] sm:$0xff]
  %v1512 = vld [vmem:[%s1459 + $0x1a0] sm:$0xff]
  %v1513 = vld [vmem:[%s1459 + $0x1a8] sm:$0xff]
  %v1514 = vld [vmem:[%s1459 + $0x1b0] sm:$0xff]
  %v1515 = vld [vmem:[%s1459 + $0x1b8] sm:$0xff]
  %v1516 = vld [vmem:[%s1459 + $0x1c0] sm:$0xff]
  %v1517 = vld [vmem:[%s1459 + $0x1c8] sm:$0xff]
  %v1518 = vld [vmem:[%s1459 + $0x1d0] sm:$0xff]
  %v1519 = vld [vmem:[%s1459 + $0x1d8] sm:$0xff]
  %v1520 = vld [vmem:[%s1459 + $0x1e0] sm:$0xff]
  %v1521 = vld [vmem:[%s1459 + $0x1e8] sm:$0xff]
  %v1522 = vld [vmem:[%s1459 + $0x1f0] sm:$0xff]
  %v1523 = vld [vmem:[%s1459 + $0x1f8] sm:$0xff]
  %1524 = vmatprep.subr.mxu0 %v1461
  %1525 = vmatpush1.msra.mxu0 %v1460
  %1526 = vmatprep.subr.mxu0 %v1463
  %1527 = vmatpush1.msra.mxu0 %v1462
  %1528 = vmatprep.subr.mxu0 %v1465
  %1529 = vmatpush1.msra.mxu0 %v1464
  %1530 = vmatprep.subr.mxu0 %v1467
  %1531 = vmatpush1.msra.mxu0 %v1466
  %1532 = vmatprep.subr.mxu0 %v1469
  %1533 = vmatpush1.msra.mxu0 %v1468
  %1534 = vmatprep.subr.mxu0 %v1471
  %1535 = vmatpush1.msra.mxu0 %v1470
  %1536 = vmatprep.subr.mxu0 %v1473
  %1537 = vmatpush1.msra.mxu0 %v1472
  %1538 = vmatprep.subr.mxu0 %v1475
  %1539 = vmatpush1.msra.mxu0 %v1474
  %1540 = vmatprep.subr.mxu0 %v1477
  %1541 = vmatpush1.msra.mxu0 %v1476
  %1542 = vmatprep.subr.mxu0 %v1479
  %1543 = vmatpush1.msra.mxu0 %v1478
  %1544 = vmatprep.subr.mxu0 %v1481
  %1545 = vmatpush1.msra.mxu0 %v1480
  %1546 = vmatprep.subr.mxu0 %v1483
  %1547 = vmatpush1.msra.mxu0 %v1482
  %1548 = vmatprep.subr.mxu0 %v1485
  %1549 = vmatpush1.msra.mxu0 %v1484
  %1550 = vmatprep.subr.mxu0 %v1487
  %1551 = vmatpush1.msra.mxu0 %v1486
  %1552 = vmatprep.subr.mxu0 %v1489
  %1553 = vmatpush1.msra.mxu0 %v1488
  %1554 = vmatprep.subr.mxu0 %v1491
  %1555 = vmatpush1.msra.mxu0 %v1490
  %1556 = vmatprep.subr.mxu0 %v1493
  %1557 = vmatpush1.msra.mxu0 %v1492
  %1558 = vmatprep.subr.mxu0 %v1495
  %1559 = vmatpush1.msra.mxu0 %v1494
  %1560 = vmatprep.subr.mxu0 %v1497
  %1561 = vmatpush1.msra.mxu0 %v1496
  %1562 = vmatprep.subr.mxu0 %v1499
  %1563 = vmatpush1.msra.mxu0 %v1498
  %1564 = vmatprep.subr.mxu0 %v1501
  %1565 = vmatpush1.msra.mxu0 %v1500
  %1566 = vmatprep.subr.mxu0 %v1503
  %1567 = vmatpush1.msra.mxu0 %v1502
  %1568 = vmatprep.subr.mxu0 %v1505
  %1569 = vmatpush1.msra.mxu0 %v1504
  %1570 = vmatprep.subr.mxu0 %v1507
  %1571 = vmatpush1.msra.mxu0 %v1506
  %1572 = vmatprep.subr.mxu0 %v1509
  %1573 = vmatpush1.msra.mxu0 %v1508
  %1574 = vmatprep.subr.mxu0 %v1511
  %1575 = vmatpush1.msra.mxu0 %v1510
  %1576 = vmatprep.subr.mxu0 %v1513
  %1577 = vmatpush1.msra.mxu0 %v1512
  %1578 = vmatprep.subr.mxu0 %v1515
  %1579 = vmatpush1.msra.mxu0 %v1514
  %1580 = vmatprep.subr.mxu0 %v1517
  %1581 = vmatpush1.msra.mxu0 %v1516
  %1582 = vmatprep.subr.mxu0 %v1519
  %1583 = vmatpush1.msra.mxu0 %v1518
  %1584 = vmatprep.subr.mxu0 %v1521
  %1585 = vmatpush1.msra.mxu0 %v1520
  %1586 = vmatprep.subr.mxu0 %v1523
  %1587 = vmatpush1.msra.mxu0 %v1522
  %1588 = vmatprep.mubr.f32.mxu0 %v1436
  %1589 = vmatmul.mubr.f32.gmra.mrb[0].mxu0 %v1433
  %v1590 = vpop.f32.mrb[0].mxu0
  %v1591 = vadd.f32 0.0, %v1590
  %v1592 = vpop.f32.mrb[0].mxu0
  %v1593 = vadd.f32 0.0, %v1592
  %1594 = vmatprep.mubr.f32.mxu0 %v1440
  %1595 = vmatmul.mubr.f32.gmra.mrb[0].mxu0 %v1438
  %v1596 = vpop.f32.mrb[0].mxu0
  %v1597 = vadd.f32 0.0, %v1596
  %v1598 = vpop.f32.mrb[0].mxu0
  %v1599 = vadd.f32 0.0, %v1598
  %1600 = vmatprep.mubr.f32.mxu0 %v1446
  %1601 = vmatmul.mubr.f32.gmra.mrb[0].mxu0 %v1443
  %v1602 = vpop.f32.mrb[0].mxu0
  %v1603 = vadd.f32 0.0, %v1602
  %v1604 = vpop.f32.mrb[0].mxu0
  %v1605 = vadd.f32 0.0, %v1604
  %1606 = vmatprep.mubr.f32.mxu0 %v1450
  %1607 = vmatmul.mubr.f32.gmra.mrb[0].mxu0 %v1448
  %v1608 = vpop.f32.mrb[0].mxu0
  %v1609 = vadd.f32 0.0, %v1608
  %v1610 = vpop.f32.mrb[0].mxu0
  %v1611 = vadd.f32 0.0, %v1610
  %1612 = vdwg.mxu0
  %v1613 = vadd.f32 %v1393, %v1591
  %v1614 = vadd.f32 %v1395, %v1593
  %v1615 = vadd.f32 %v1399, %v1597
  %v1616 = vadd.f32 %v1401, %v1599
  %v1617 = vadd.f32 %v1405, %v1603
  %v1618 = vadd.f32 %v1407, %v1605
  %v1619 = vadd.f32 %v1411, %v1609
  %v1620 = vadd.f32 %v1413, %v1611
  %v1621 = vadd.f32 %v1613, %v1615
  %v1622 = vadd.f32 %v1621, %v1617
  %v1623 = vadd.f32 %v1622, %v1619
  %v1624 = vrot.slane %v1623, 4
  %v1625 = vadd.f32 %v1623, %v1624
  %v1626 = vrot.slane %v1625, 2
  %v1627 = vadd.f32 %v1625, %v1626
  %v1628 = vrot.slane %v1627, 1
  %v1629 = vadd.f32 %v1627, %v1628
  %v1630 = vadd.f32 %v1614, %v1616
  %v1631 = vadd.f32 %v1630, %v1618
  %v1632 = vadd.f32 %v1631, %v1620
  %v1633 = vrot.slane %v1632, 4
  %v1634 = vadd.f32 %v1632, %v1633
  %v1635 = vrot.slane %v1634, 2
  %v1636 = vadd.f32 %v1634, %v1635
  %v1637 = vrot.slane %v1636, 1
  %v1638 = vadd.f32 %v1636, %v1637
  %v1639 = vmul.f32 %v1613, %v1613
  %v1640 = vmul.f32 %v1614, %v1614
  %v1641 = vmul.f32 %v1615, %v1615
  %v1642 = vmul.f32 %v1616, %v1616
  %v1643 = vmul.f32 %v1617, %v1617
  %v1644 = vmul.f32 %v1618, %v1618
  %v1645 = vmul.f32 %v1619, %v1619
  %v1646 = vmul.f32 %v1620, %v1620
  %v1647 = vadd.f32 %v1639, %v1641
  %v1648 = vadd.f32 %v1647, %v1643
  %v1649 = vadd.f32 %v1648, %v1645
  %v1650 = vrot.slane %v1649, 4
  %v1651 = vadd.f32 %v1649, %v1650
  %v1652 = vrot.slane %v1651, 2
  %v1653 = vadd.f32 %v1651, %v1652
  %v1654 = vrot.slane %v1653, 1
  %v1655 = vadd.f32 %v1653, %v1654
  %v1656 = vadd.f32 %v1640, %v1642
  %v1657 = vadd.f32 %v1656, %v1644
  %v1658 = vadd.f32 %v1657, %v1646
  %v1659 = vrot.slane %v1658, 4
  %v1660 = vadd.f32 %v1658, %v1659
  %v1661 = vrot.slane %v1660, 2
  %v1662 = vadd.f32 %v1660, %v1661
  %v1663 = vrot.slane %v1662, 1
  %v1664 = vadd.f32 %v1662, %v1663
  %v1665 = vld [vmem:[%s3] sm:$0xff]
  %v1666 = vld [vmem:[%s3 + $0x8] sm:$0xff]
  %v1667 = vld [vmem:[%s3 + $0x10] sm:$0xff]
  %v1668 = vld [vmem:[%s3 + $0x18] sm:$0xff]
  %v1669 = vld [vmem:[%s3 + $0x20] sm:$0xff]
  %v1670 = vld [vmem:[%s3 + $0x28] sm:$0xff]
  %v1671 = vld [vmem:[%s3 + $0x30] sm:$0xff]
  %v1672 = vld [vmem:[%s3 + $0x38] sm:$0xff]
  %v1673 = vld [vmem:[%s3 + $0x40] sm:$0xff]
  %v1674 = vld [vmem:[%s3 + $0x48] sm:$0xff]
  %v1675 = vld [vmem:[%s3 + $0x50] sm:$0xff]
  %v1676 = vld [vmem:[%s3 + $0x58] sm:$0xff]
  %v1677 = vld [vmem:[%s3 + $0x60] sm:$0xff]
  %v1678 = vld [vmem:[%s3 + $0x68] sm:$0xff]
  %v1679 = vld [vmem:[%s3 + $0x70] sm:$0xff]
  %v1680 = vld [vmem:[%s3 + $0x78] sm:$0xff]
  %v1681 = vld [vmem:[%s3 + $0x80] sm:$0xff]
  %v1682 = vld [vmem:[%s3 + $0x88] sm:$0xff]
  %v1683 = vld [vmem:[%s3 + $0x90] sm:$0xff]
  %v1684 = vld [vmem:[%s3 + $0x98] sm:$0xff]
  %v1685 = vld [vmem:[%s3 + $0xa0] sm:$0xff]
  %v1686 = vld [vmem:[%s3 + $0xa8] sm:$0xff]
  %v1687 = vld [vmem:[%s3 + $0xb0] sm:$0xff]
  %v1688 = vld [vmem:[%s3 + $0xb8] sm:$0xff]
  %v1689 = vld [vmem:[%s3 + $0xc0] sm:$0xff]
  %v1690 = vld [vmem:[%s3 + $0xc8] sm:$0xff]
  %v1691 = vld [vmem:[%s3 + $0xd0] sm:$0xff]
  %v1692 = vld [vmem:[%s3 + $0xd8] sm:$0xff]
  %v1693 = vld [vmem:[%s3 + $0xe0] sm:$0xff]
  %v1694 = vld [vmem:[%s3 + $0xe8] sm:$0xff]
  %v1695 = vld [vmem:[%s3 + $0xf0] sm:$0xff]
  %v1696 = vld [vmem:[%s3 + $0xf8] sm:$0xff]
  %v1697 = vld [vmem:[%s3 + $0x100] sm:$0xff]
  %v1698 = vld [vmem:[%s3 + $0x108] sm:$0xff]
  %v1699 = vld [vmem:[%s3 + $0x110] sm:$0xff]
  %v1700 = vld [vmem:[%s3 + $0x118] sm:$0xff]
  %v1701 = vld [vmem:[%s3 + $0x120] sm:$0xff]
  %v1702 = vld [vmem:[%s3 + $0x128] sm:$0xff]
  %v1703 = vld [vmem:[%s3 + $0x130] sm:$0xff]
  %v1704 = vld [vmem:[%s3 + $0x138] sm:$0xff]
  %v1705 = vld [vmem:[%s3 + $0x140] sm:$0xff]
  %v1706 = vld [vmem:[%s3 + $0x148] sm:$0xff]
  %v1707 = vld [vmem:[%s3 + $0x150] sm:$0xff]
  %v1708 = vld [vmem:[%s3 + $0x158] sm:$0xff]
  %v1709 = vld [vmem:[%s3 + $0x160] sm:$0xff]
  %v1710 = vld [vmem:[%s3 + $0x168] sm:$0xff]
  %v1711 = vld [vmem:[%s3 + $0x170] sm:$0xff]
  %v1712 = vld [vmem:[%s3 + $0x178] sm:$0xff]
  %v1713 = vld [vmem:[%s3 + $0x180] sm:$0xff]
  %v1714 = vld [vmem:[%s3 + $0x188] sm:$0xff]
  %v1715 = vld [vmem:[%s3 + $0x190] sm:$0xff]
  %v1716 = vld [vmem:[%s3 + $0x198] sm:$0xff]
  %v1717 = vld [vmem:[%s3 + $0x1a0] sm:$0xff]
  %v1718 = vld [vmem:[%s3 + $0x1a8] sm:$0xff]
  %v1719 = vld [vmem:[%s3 + $0x1b0] sm:$0xff]
  %v1720 = vld [vmem:[%s3 + $0x1b8] sm:$0xff]
  %v1721 = vld [vmem:[%s3 + $0x1c0] sm:$0xff]
  %v1722 = vld [vmem:[%s3 + $0x1c8] sm:$0xff]
  %v1723 = vld [vmem:[%s3 + $0x1d0] sm:$0xff]
  %v1724 = vld [vmem:[%s3 + $0x1d8] sm:$0xff]
  %v1725 = vld [vmem:[%s3 + $0x1e0] sm:$0xff]
  %v1726 = vld [vmem:[%s3 + $0x1e8] sm:$0xff]
  %v1727 = vld [vmem:[%s3 + $0x1f0] sm:$0xff]
  %v1728 = vld [vmem:[%s3 + $0x1f8] sm:$0xff]
  %1729 = vmatprep.subr.mxu0 %v1666
  %1730 = vmatpush1.msra.mxu0 %v1665
  %1731 = vmatprep.subr.mxu0 %v1668
  %1732 = vmatpush1.msra.mxu0 %v1667
  %1733 = vmatprep.subr.mxu0 %v1670
  %1734 = vmatpush1.msra.mxu0 %v1669
  %1735 = vmatprep.subr.mxu0 %v1672
  %1736 = vmatpush1.msra.mxu0 %v1671
  %1737 = vmatprep.subr.mxu0 %v1674
  %1738 = vmatpush1.msra.mxu0 %v1673
  %1739 = vmatprep.subr.mxu0 %v1676
  %1740 = vmatpush1.msra.mxu0 %v1675
  %1741 = vmatprep.subr.mxu0 %v1678
  %1742 = vmatpush1.msra.mxu0 %v1677
  %1743 = vmatprep.subr.mxu0 %v1680
  %1744 = vmatpush1.msra.mxu0 %v1679
  %1745 = vmatprep.subr.mxu0 %v1682
  %1746 = vmatpush1.msra.mxu0 %v1681
  %1747 = vmatprep.subr.mxu0 %v1684
  %1748 = vmatpush1.msra.mxu0 %v1683
  %1749 = vmatprep.subr.mxu0 %v1686
  %1750 = vmatpush1.msra.mxu0 %v1685
  %1751 = vmatprep.subr.mxu0 %v1688
  %1752 = vmatpush1.msra.mxu0 %v1687
  %1753 = vmatprep.subr.mxu0 %v1690
  %1754 = vmatpush1.msra.mxu0 %v1689
  %1755 = vmatprep.subr.mxu0 %v1692
  %1756 = vmatpush1.msra.mxu0 %v1691
  %1757 = vmatprep.subr.mxu0 %v1694
  %1758 = vmatpush1.msra.mxu0 %v1693
  %1759 = vmatprep.subr.mxu0 %v1696
  %1760 = vmatpush1.msra.mxu0 %v1695
  %1761 = vmatprep.subr.mxu0 %v1698
  %1762 = vmatpush1.msra.mxu0 %v1697
  %1763 = vmatprep.subr.mxu0 %v1700
  %1764 = vmatpush1.msra.mxu0 %v1699
  %1765 = vmatprep.subr.mxu0 %v1702
  %1766 = vmatpush1.msra.mxu0 %v1701
  %1767 = vmatprep.subr.mxu0 %v1704
  %1768 = vmatpush1.msra.mxu0 %v1703
  %1769 = vmatprep.subr.mxu0 %v1706
  %1770 = vmatpush1.msra.mxu0 %v1705
  %1771 = vmatprep.subr.mxu0 %v1708
  %1772 = vmatpush1.msra.mxu0 %v1707
  %1773 = vmatprep.subr.mxu0 %v1710
  %1774 = vmatpush1.msra.mxu0 %v1709
  %1775 = vmatprep.subr.mxu0 %v1712
  %1776 = vmatpush1.msra.mxu0 %v1711
  %1777 = vmatprep.subr.mxu0 %v1714
  %1778 = vmatpush1.msra.mxu0 %v1713
  %1779 = vmatprep.subr.mxu0 %v1716
  %1780 = vmatpush1.msra.mxu0 %v1715
  %1781 = vmatprep.subr.mxu0 %v1718
  %1782 = vmatpush1.msra.mxu0 %v1717
  %1783 = vmatprep.subr.mxu0 %v1720
  %1784 = vmatpush1.msra.mxu0 %v1719
  %1785 = vmatprep.subr.mxu0 %v1722
  %1786 = vmatpush1.msra.mxu0 %v1721
  %1787 = vmatprep.subr.mxu0 %v1724
  %1788 = vmatpush1.msra.mxu0 %v1723
  %1789 = vmatprep.subr.mxu0 %v1726
  %1790 = vmatpush1.msra.mxu0 %v1725
  %1791 = vmatprep.subr.mxu0 %v1728
  %1792 = vmatpush1.msra.mxu0 %v1727
  %1793 = vmatprep.mubr.f32.mxu0 %v1638
  %1794 = vmatmul.mubr.f32.gmra.mrb[0].mxu0 %v1629
  %v1795 = vpop.f32.mrb[0].mxu0
  %v1796 = vadd.f32 0.0, %v1795
  %v1797 = vpop.f32.mrb[0].mxu0
  %v1798 = vadd.f32 0.0, %v1797
  %1799 = vdwg.mxu0
  %1800 = vmatprep.subr.mxu0 %v1666
  %1801 = vmatpush1.msra.mxu0 %v1665
  %1802 = vmatprep.subr.mxu0 %v1668
  %1803 = vmatpush1.msra.mxu0 %v1667
  %1804 = vmatprep.subr.mxu0 %v1670
  %1805 = vmatpush1.msra.mxu0 %v1669
  %1806 = vmatprep.subr.mxu0 %v1672
  %1807 = vmatpush1.msra.mxu0 %v1671
  %1808 = vmatprep.subr.mxu0 %v1674
  %1809 = vmatpush1.msra.mxu0 %v1673
  %1810 = vmatprep.subr.mxu0 %v1676
  %1811 = vmatpush1.msra.mxu0 %v1675
  %1812 = vmatprep.subr.mxu0 %v1678
  %1813 = vmatpush1.msra.mxu0 %v1677
  %1814 = vmatprep.subr.mxu0 %v1680
  %1815 = vmatpush1.msra.mxu0 %v1679
  %1816 = vmatprep.subr.mxu0 %v1682
  %1817 = vmatpush1.msra.mxu0 %v1681
  %1818 = vmatprep.subr.mxu0 %v1684
  %1819 = vmatpush1.msra.mxu0 %v1683
  %1820 = vmatprep.subr.mxu0 %v1686
  %1821 = vmatpush1.msra.mxu0 %v1685
  %1822 = vmatprep.subr.mxu0 %v1688
  %1823 = vmatpush1.msra.mxu0 %v1687
  %1824 = vmatprep.subr.mxu0 %v1690
  %1825 = vmatpush1.msra.mxu0 %v1689
  %1826 = vmatprep.subr.mxu0 %v1692
  %1827 = vmatpush1.msra.mxu0 %v1691
  %1828 = vmatprep.subr.mxu0 %v1694
  %1829 = vmatpush1.msra.mxu0 %v1693
  %1830 = vmatprep.subr.mxu0 %v1696
  %1831 = vmatpush1.msra.mxu0 %v1695
  %1832 = vmatprep.subr.mxu0 %v1698
  %1833 = vmatpush1.msra.mxu0 %v1697
  %1834 = vmatprep.subr.mxu0 %v1700
  %1835 = vmatpush1.msra.mxu0 %v1699
  %1836 = vmatprep.subr.mxu0 %v1702
  %1837 = vmatpush1.msra.mxu0 %v1701
  %1838 = vmatprep.subr.mxu0 %v1704
  %1839 = vmatpush1.msra.mxu0 %v1703
  %1840 = vmatprep.subr.mxu0 %v1706
  %1841 = vmatpush1.msra.mxu0 %v1705
  %1842 = vmatprep.subr.mxu0 %v1708
  %1843 = vmatpush1.msra.mxu0 %v1707
  %1844 = vmatprep.subr.mxu0 %v1710
  %1845 = vmatpush1.msra.mxu0 %v1709
  %1846 = vmatprep.subr.mxu0 %v1712
  %1847 = vmatpush1.msra.mxu0 %v1711
  %1848 = vmatprep.subr.mxu0 %v1714
  %1849 = vmatpush1.msra.mxu0 %v1713
  %1850 = vmatprep.subr.mxu0 %v1716
  %1851 = vmatpush1.msra.mxu0 %v1715
  %1852 = vmatprep.subr.mxu0 %v1718
  %1853 = vmatpush1.msra.mxu0 %v1717
  %1854 = vmatprep.subr.mxu0 %v1720
  %1855 = vmatpush1.msra.mxu0 %v1719
  %1856 = vmatprep.subr.mxu0 %v1722
  %1857 = vmatpush1.msra.mxu0 %v1721
  %1858 = vmatprep.subr.mxu0 %v1724
  %1859 = vmatpush1.msra.mxu0 %v1723
  %1860 = vmatprep.subr.mxu0 %v1726
  %1861 = vmatpush1.msra.mxu0 %v1725
  %1862 = vmatprep.subr.mxu0 %v1728
  %1863 = vmatpush1.msra.mxu0 %v1727
  %1864 = vmatprep.mubr.f32.mxu0 %v1664
  %1865 = vmatmul.mubr.f32.gmra.mrb[0].mxu0 %v1655
  %v1866 = vpop.f32.mrb[0].mxu0
  %v1867 = vadd.f32 0.0, %v1866
  %v1868 = vpop.f32.mrb[0].mxu0
  %v1869 = vadd.f32 0.0, %v1868
  %1870 = vdwg.mxu0
  %v1871 = vmul.f32 %v1796, 0.001953125
  %v1872 = vmul.f32 %v1798, 0.001953125
  %v1873 = vmul.f32 %v1867, 0.001953125
  %v1874 = vmul.f32 %v1869, 0.001953125
  %v1875 = vmul.f32 %v1871, %v1871
  %v1876 = vmul.f32 %v1872, %v1872
  %v1877 = vsub.f32 %v1873, %v1875
  %v1878 = vsub.f32 %v1874, %v1876
  %s1879 = scalar_lea.vmem %s2, 2
  %v1880 = vld [vmem:[%s1879] ss:$4 sm:$0x3]
  %s1881 = scalar_lea.vmem %s2, 3
  %v1882 = vld [vmem:[%s1881] ss:$4 sm:$0x3]
  %v1883 = vadd.f32 %v1877, 1e-05
  %v1884 = vadd.f32 %v1878, 1e-05
  %v1885 = vrsqrt.pop %v1883
  %v1886 = vrsqrt.pop %v1884
  %v1889 = vcombine.low %v1885, %v1886
  %v1891 = vunpack.c.l.s4 1966171168
  %v1892 = vunpack.c.0.s8 %v1891
  %v1893 = vlaneseq
  %v1894 = vshrl.u32 %v1893, 7
  %v1895 = vsub.s32 %v1892, %v1894
  %v1896 = vrot.slane %v1889, %v1895
  %v1898 = vunpack.c.l.s4 1966171168
  %v1899 = vunpack.c.0.s8 %v1898
  %v1900 = vlaneseq
  %v1901 = vshrl.u32 %v1900, 7
  %v1902 = vsub.s32 %v1899, %v1901
  %v1903 = vrot.slane %v1896, %v1902
  %v1905 = vmul.f32 %v1880, %v1903
  %v1907 = vlaneseq
  %v1908 = vshrl.u32 %v1907, 7
  %v1909 = vsub.s32 0, %v1908
  %v1910 = vrot.slane %v1905, %v1909
  %v1911 = vlaneseq
  %v1912 = vshrl.u32 %v1911, 7
  %v1913 = vsub.s32 1, %v1912
  %v1914 = vrot.slane %v1905, %v1913
  %v1917 = vmul.f32 %v1871, %v1910
  %v1918 = vmul.f32 %v1872, %v1914
  %v1921 = vcombine.low %v1917, %v1918
  %v1923 = vunpack.c.l.s4 1966171168
  %v1924 = vunpack.c.0.s8 %v1923
  %v1925 = vlaneseq
  %v1926 = vshrl.u32 %v1925, 7
  %v1927 = vsub.s32 %v1924, %v1926
  %v1928 = vrot.slane %v1921, %v1927
  %v1930 = vunpack.c.l.s4 1966171168
  %v1931 = vunpack.c.0.s8 %v1930
  %v1932 = vlaneseq
  %v1933 = vshrl.u32 %v1932, 7
  %v1934 = vsub.s32 %v1931, %v1933
  %v1935 = vrot.slane %v1928, %v1934
  %v1937 = vsub.f32 %v1882, %v1935
  %v1938 = vmul.f32 %v1613, %v1910
  %v1939 = vmul.f32 %v1614, %v1914
  %v1940 = vmul.f32 %v1615, %v1910
  %v1941 = vmul.f32 %v1616, %v1914
  %v1942 = vmul.f32 %v1617, %v1910
  %v1943 = vmul.f32 %v1618, %v1914
  %v1944 = vmul.f32 %v1619, %v1910
  %v1945 = vmul.f32 %v1620, %v1914
  %v1947 = vlaneseq
  %v1948 = vshrl.u32 %v1947, 7
  %v1949 = vsub.s32 0, %v1948
  %v1950 = vrot.slane %v1937, %v1949
  %v1951 = vlaneseq
  %v1952 = vshrl.u32 %v1951, 7
  %v1953 = vsub.s32 1, %v1952
  %v1954 = vrot.slane %v1937, %v1953
  %v1957 = vadd.f32 %v1938, %v1950
  %v1958 = vadd.f32 %v1939, %v1954
  %v1959 = vadd.f32 %v1940, %v1950
  %v1960 = vadd.f32 %v1941, %v1954
  %v1961 = vadd.f32 %v1942, %v1950
  %v1962 = vadd.f32 %v1943, %v1954
  %v1963 = vadd.f32 %v1944, %v1950
  %v1964 = vadd.f32 %v1945, %v1954
  %v1965 = vmax.f32 %v1957, 0.0
  %v1966 = vmax.f32 %v1958, 0.0
  %v1967 = vmax.f32 %v1959, 0.0
  %v1968 = vmax.f32 %v1960, 0.0
  %v1969 = vmax.f32 %v1961, 0.0
  %v1970 = vmax.f32 %v1962, 0.0
  %v1971 = vmax.f32 %v1963, 0.0
  %v1972 = vmax.f32 %v1964, 0.0
  %v1973 = vld [vmem:[%s0] sm:$0xff]
  %v1974 = vld [vmem:[%s0 + $0x8] sm:$0xff]
  %v1975 = vld [vmem:[%s0 + $0x10] sm:$0xff]
  %v1976 = vld [vmem:[%s0 + $0x18] sm:$0xff]
  %v1977 = vld [vmem:[%s0 + $0x20] sm:$0xff]
  %v1978 = vld [vmem:[%s0 + $0x28] sm:$0xff]
  %v1979 = vld [vmem:[%s0 + $0x30] sm:$0xff]
  %v1980 = vld [vmem:[%s0 + $0x38] sm:$0xff]
  %v1981 = vadd.f32 %v1965, %v1973
  %v1982 = vadd.f32 %v1966, %v1974
  %v1983 = vadd.f32 %v1967, %v1975
  %v1984 = vadd.f32 %v1968, %v1976
  %v1985 = vadd.f32 %v1969, %v1977
  %v1986 = vadd.f32 %v1970, %v1978
  %v1987 = vadd.f32 %v1971, %v1979
  %v1988 = vadd.f32 %v1972, %v1980
  %v1989 = vmax.f32 %v1981, 0.0
  %v1990 = vmax.f32 %v1982, 0.0
  %v1991 = vmax.f32 %v1983, 0.0
  %v1992 = vmax.f32 %v1984, 0.0
  %v1993 = vmax.f32 %v1985, 0.0
  %v1994 = vmax.f32 %v1986, 0.0
  %v1995 = vmax.f32 %v1987, 0.0
  %v1996 = vmax.f32 %v1988, 0.0
  %1997 = vst [vmem:[%s4] sm:$0xff] %v1989
  %1998 = vst [vmem:[%s4 + $0x8] sm:$0xff] %v1990
  %1999 = vst [vmem:[%s4 + $0x10] sm:$0xff] %v1991
  %2000 = vst [vmem:[%s4 + $0x18] sm:$0xff] %v1992
  %2001 = vst [vmem:[%s4 + $0x20] sm:$0xff] %v1993
  %2002 = vst [vmem:[%s4 + $0x28] sm:$0xff] %v1994
  %2003 = vst [vmem:[%s4 + $0x30] sm:$0xff] %v1995
  %2004 = vst [vmem:[%s4 + $0x38] sm:$0xff] %v1996
  // Predicated region
  $region18: #{residual_block.1} parent=0 // pred_check
    _
  $region19: #{residual_block.1} parent=0 // pred_check_branch
    %2006 = sbr.rel (0) target = $region21
  $region20: #{residual_block.1} parent=0 // pred_region
    _
  $region21: #{residual_block.1} parent=0 // pred_fallthru
    _
  // Predicated region
  $region22: #{residual_block.1} parent=0 // pred_check
    _
  $region23: #{residual_block.1} parent=0 // pred_check_branch
    %2008 = sbr.rel (0) target = $region25
  $region24: #{residual_block.1} parent=0 // pred_region
    _
  $region25: #{residual_block.1} parent=0 // pred_fallthru
    _

</llo_original>
